<compile_context>
chip_gen: v6e
topology: v6e:2x2x1
jax: 0.10.0
libtpu: 0.0.40
codegen_flags: <defaults>
</compile_context>

<pallas_src>
import functools
import math

import jax
import jax.numpy as jnp
from jax import lax
from jax.experimental import pallas as pl
from jax.experimental.pallas import tpu as pltpu


def _round_up(n, m):
    return ((n + m - 1) // m) * m


def _choose_batch_block(B, T):
    """~256 rows per attention grid step, but keep >=2 steps when B >= 2."""
    bb = max(1, min(B, pl.cdiv(256, max(T, 1))))
    if B >= 2:
        bb = min(bb, (B + 1) // 2)
    return bb


def _choose_row_tile(M, tm):
    """MLP row tile: multiple of 8, >=2 row blocks when M permits (v7x)."""
    tm = _round_up(max(8, tm), 8)
    tm = min(tm, _round_up(M, 8))
    if M > 8:
        tm = min(tm, _round_up(pl.cdiv(M, 2), 8))
    return tm


def _choose_hidden_block(H, th):
    """Largest multiple of 128 that divides H and is <= th (fallback: H)."""
    cand = (min(th, H) // 128) * 128
    while cand >= 128:
        if H % cand == 0:
            return cand
        cand -= 128
    # TODO(synk): H not a multiple of 128 -> single hidden block (no streaming)
    return H


# ----------------------------------------------------------------------------
# Attention block kernel: out = x + c_proj(causal_attn(ln_1(x)))
# One grid step handles Bb batch elements; projections run on the flattened
# (Bb*T, C) row slab; per-head scores/softmax/PV use batched einsums.
# ----------------------------------------------------------------------------
def _attn_block_kernel(x_ref, g_ref, b_ref, wqkv_ref, bqkv_ref, wp_ref, bp_ref,
                       o_ref, *, n_head, head_dim):
    Bb, T, C = x_ref.shape
    M = Bb * T

    x = x_ref[...].astype(jnp.float32).reshape(M, C)

    # LayerNorm (eps = 1e-5, biased variance, matches F.layer_norm) in f32.
    mu = jnp.mean(x, axis=-1, keepdims=True)
    var = jnp.mean(jnp.square(x - mu), axis=-1, keepdims=True)
    xn = (x - mu) * lax.rsqrt(var + 1e-5)
    xn = xn * g_ref[...] + b_ref[...]

    # Fused qkv projection: (Bb*T, C) @ (C, 3C) on the bf16 MXU, f32 accum.
    qkv = jnp.dot(xn.astype(jnp.bfloat16), wqkv_ref[...],
                  preferred_element_type=jnp.float32) + bqkv_ref[...]
    qkv = qkv.reshape(Bb, T, 3 * C)

    scale = 1.0 / math.sqrt(head_dim)
    row = lax.broadcasted_iota(jnp.int32, (T, T), 0)
    col = lax.broadcasted_iota(jnp.int32, (T, T), 1)
    causal = row >= col                       # broadcast over the batch dim

    wp = wp_ref[...]                          # (C, C) bf16, resident
    acc = jnp.zeros((M, C), jnp.float32)
    for h in range(n_head):                   # n_head small -> unrolled
        lo = h * head_dim
        q = qkv[:, :, lo:lo + head_dim].astype(jnp.bfloat16)
        k = qkv[:, :, C + lo:C + lo + head_dim].astype(jnp.bfloat16)
        v = qkv[:, :, 2 * C + lo:2 * C + lo + head_dim].astype(jnp.bfloat16)

        s = jnp.einsum("bqd,bkd->bqk", q, k,
                       preferred_element_type=jnp.float32) * scale
        # -1e30 instead of -inf: safe for causal masks (diagonal never masked).
        s = jnp.where(causal, s, -1e30)
        s = s - jnp.max(s, axis=-1, keepdims=True)
        p = jnp.exp(s)
        p = p * pl.reciprocal(jnp.sum(p, axis=-1, keepdims=True), approx=True)

        y = jnp.einsum("bqk,bkd->bqd", p.astype(jnp.bfloat16), v,
                       preferred_element_type=jnp.float32)   # (Bb, T, hd)
        # Fold the head concat into c_proj: acc += y_h @ W_proj[head rows].
        acc += jnp.dot(y.reshape(M, head_dim).astype(jnp.bfloat16),
                       wp[lo:lo + head_dim, :],
                       preferred_element_type=jnp.float32)

    out = x + acc + bp_ref[...]               # residual add
    o_ref[...] = out.reshape(Bb, T, C).astype(o_ref.dtype)


def attn_block_pallas(x, ln_g, ln_b, wqkv, bqkv, wproj, bproj, *, n_head,
                      bb=None):
    B, T, C = x.shape
    assert C % n_head == 0
    head_dim = C // n_head

    if bb is None:
        bb = _choose_batch_block(B, T)
    B_pad = _round_up(B, bb)
    xp = x if B_pad == B else jnp.pad(x, ((0, B_pad - B), (0, 0), (0, 0)))

    # bf16 weights: halves HBM traffic / VMEM residency, native MXU rate.
    wqkv_lo = wqkv.astype(jnp.bfloat16)
    wproj_lo = wproj.astype(jnp.bfloat16)

    n_blocks = B_pad // bb
    kernel = functools.partial(_attn_block_kernel, n_head=n_head,
                               head_dim=head_dim)

    att_vmem = (2 * 2 * bb * T * C * 4            # x + out blocks, dbl-buffered
                + 2 * 4 * C * C * 2               # bf16 qkv+proj weights, dbl
                + 2 * 6 * C * 4                   # biases + ln params
                + bb * T * 5 * C * 4)             # in-kernel qkv/acc temporaries
    vmem_limit = int(min(40 * 1024 * 1024,
                         max(16 * 1024 * 1024, att_vmem + 8 * 1024 * 1024)))

    flops = 2 * B * T * C * 3 * C + 4 * B * T * T * C + 2 * B * T * C * C
    bytes_accessed = (4 * 2 * B_pad * T * C        # x in + out (f32)
                      + 2 * 4 * C * C * n_blocks   # bf16 weights per batch blk
                      + 4 * 6 * C)

    out = pl.pallas_call(
        kernel,
        out_shape=jax.ShapeDtypeStruct((B_pad, T, C), x.dtype),
        grid_spec=pltpu.PrefetchScalarGridSpec(
            num_scalar_prefetch=0,
            grid=(n_blocks,),
            in_specs=[
                pl.BlockSpec((bb, T, C), lambda i: (i, 0, 0)),   # x block
                pl.BlockSpec((1, C), lambda i: (0, 0)),          # ln1 weight
                pl.BlockSpec((1, C), lambda i: (0, 0)),          # ln1 bias
                pl.BlockSpec((C, 3 * C), lambda i: (0, 0)),      # W_qkv (bf16)
                pl.BlockSpec((1, 3 * C), lambda i: (0, 0)),      # b_qkv
                pl.BlockSpec((C, C), lambda i: (0, 0)),          # W_proj (bf16)
                pl.BlockSpec((1, C), lambda i: (0, 0)),          # b_proj
            ],
            out_specs=pl.BlockSpec((bb, T, C), lambda i: (i, 0, 0)),
        ),
        compiler_params=pltpu.CompilerParams(
            dimension_semantics=("parallel",),
            vmem_limit_bytes=vmem_limit),
        cost_estimate=pl.CostEstimate(
            flops=int(flops),
            transcendentals=int(B * n_head * T * T),
            bytes_accessed=int(bytes_accessed)),
    )(xp, ln_g, ln_b, wqkv_lo, bqkv, wproj_lo, bproj)

    return out[:B] if B_pad != B else out


# ----------------------------------------------------------------------------
# MLP block kernel: out = x + c_proj(gelu(c_fc(ln_2(x))))
# Grid = (row tiles ["parallel"], hidden blocks ["arbitrary"]).
# ----------------------------------------------------------------------------
def _mlp_block_kernel(x_ref, g_ref, b_ref, w1_ref, b1_ref, w2_ref, b2_ref,
                      o_ref, acc_ref, xn_ref):
    k = pl.program_id(1)

    @pl.when(k == 0)
    def _():
        # LayerNorm once per row tile; keep normalized activations (bf16) and
        # the f32 accumulator resident in scratch across the hidden axis.
        x = x_ref[...].astype(jnp.float32)
        mu = jnp.mean(x, axis=-1, keepdims=True)
        var = jnp.mean(jnp.square(x - mu), axis=-1, keepdims=True)
        xn = (x - mu) * lax.rsqrt(var + 1e-5)
        xn = xn * g_ref[...] + b_ref[...]
        xn_ref[...] = xn.astype(xn_ref.dtype)
        acc_ref[...] = jnp.zeros_like(acc_ref)

    # c_fc column block: (tm, C) @ (C, th) on the bf16 MXU, f32 accumulate.
    h = jnp.dot(xn_ref[...], w1_ref[...], preferred_element_type=jnp.float32)
    h = h + b1_ref[...]
    # Exact erf-GELU in f32 (matches torch.nn.GELU() default).
    h = 0.5 * h * (1.0 + lax.erf(h * (1.0 / math.sqrt(2.0))))
    # c_proj row block: (tm, th) @ (th, C), accumulate over hidden blocks.
    acc_ref[...] += jnp.dot(h.astype(w2_ref.dtype), w2_ref[...],
                            preferred_element_type=jnp.float32)

    @pl.when(k == pl.num_programs(1) - 1)
    def _():
        out = acc_ref[...] + b2_ref[...] + x_ref[...].astype(jnp.float32)
        o_ref[...] = out.astype(o_ref.dtype)              # residual add


def mlp_block_pallas(x, ln_g, ln_b, w1, b1, w2, b2, *, tm=256, th=256):
    B, T, C = x.shape
    H = w1.shape[1]
    M = B * T

    tm = _choose_row_tile(M, tm)
    th = _choose_hidden_block(H, th)
    M_pad = _round_up(M, tm)

    x2d = x.reshape(M, C)
    if M_pad != M:
        # Padded rows see zero-variance LayerNorm (finite) and are discarded.
        x2d = jnp.pad(x2d, ((0, M_pad - M), (0, 0)))

    # Streamed weights in bf16 (halves weight HBM traffic; f32 accumulation).
    w1_lo = w1.astype(jnp.bfloat16)
    w2_lo = w2.astype(jnp.bfloat16)

    n_row_tiles = M_pad // tm
    grid = (n_row_tiles, H // th)

    vmem_bytes = (2 * 2 * tm * C * 4          # x + out tiles, double-buffered
                  + 2 * C * th * 2            # W1 block (bf16), double-buffered
                  + 2 * th * C * 2            # W2 block (bf16), double-buffered
                  + 2 * (th + 3 * C) * 4      # biases + ln params
                  + tm * C * (4 + 2)          # acc (f32) + xn (bf16) scratch
                  + tm * th * 4)              # hidden intermediate
    vmem_limit = int(min(40 * 1024 * 1024,
                         max(16 * 1024 * 1024, vmem_bytes + 8 * 1024 * 1024)))

    flops = 4 * M * C * H
    bytes_accessed = (4 * 2 * M_pad * C                     # x in + out (f32)
                      + 2 * (C * H + H * C) * n_row_tiles   # bf16 weights/tile
                      + 4 * (H + 3 * C))

    out2d = pl.pallas_call(
        _mlp_block_kernel,
        out_shape=jax.ShapeDtypeStruct((M_pad, C), x.dtype),
        grid_spec=pltpu.PrefetchScalarGridSpec(
            num_scalar_prefetch=0,
            grid=grid,
            in_specs=[
                pl.BlockSpec((tm, C), lambda i, k: (i, 0)),     # x tile
                pl.BlockSpec((1, C), lambda i, k: (0, 0)),      # ln2 weight
                pl.BlockSpec((1, C), lambda i, k: (0, 0)),      # ln2 bias
                pl.BlockSpec((C, th), lambda i, k: (0, k)),     # W1 column blk
                pl.BlockSpec((1, th), lambda i, k: (0, k)),     # b1 blk
                pl.BlockSpec((th, C), lambda i, k: (k, 0)),     # W2 row blk
                pl.BlockSpec((1, C), lambda i, k: (0, 0)),      # b2
            ],
            out_specs=pl.BlockSpec((tm, C), lambda i, k: (i, 0)),
            scratch_shapes=[
                pltpu.VMEM((tm, C), jnp.float32),    # accumulator
                pltpu.VMEM((tm, C), jnp.bfloat16),   # ln-normalized x
            ],
        ),
        compiler_params=pltpu.CompilerParams(
            dimension_semantics=("parallel", "arbitrary"),
            vmem_limit_bytes=vmem_limit),
        cost_estimate=pl.CostEstimate(
            flops=int(flops),
            transcendentals=int(M * H),
            bytes_accessed=int(bytes_accessed)),
    )(x2d, ln_g, ln_b, w1_lo, b1, w2_lo, b2)

    return out2d[:M].reshape(B, T, C)


def block_forward(x, p, *, n_head, tm=256, th=256):
    x = attn_block_pallas(x, p["ln1_g"], p["ln1_b"], p["wqkv"], p["bqkv"],
                          p["wproj"], p["bproj"], n_head=n_head)
    x = mlp_block_pallas(x, p["ln2_g"], p["ln2_b"], p["w1"], p["b1"],
                         p["w2"], p["b2"], tm=tm, th=th)
    return x


# ----------------------------------------------------------------------------
# Parameter init (nn.Linear default: U(+-1/sqrt(fan_in))) and JAX reference.
# ----------------------------------------------------------------------------
def init_params(key, n_embd):
    C = n_embd
    H = 4 * C
    ks = jax.random.split(key, 8)
    lim_c = 1.0 / math.sqrt(C)
    lim_h = 1.0 / math.sqrt(H)
    u = jax.random.uniform
    return {
        "ln1_g": jnp.ones((1, C), jnp.float32),
        "ln1_b": jnp.zeros((1, C), jnp.float32),
        "wqkv": u(ks[0], (C, 3 * C), jnp.float32, -lim_c, lim_c),
        "bqkv": u(ks[1], (1, 3 * C), jnp.float32, -lim_c, lim_c),
        "wproj": u(ks[2], (C, C), jnp.float32, -lim_c, lim_c),
        "bproj": u(ks[3], (1, C), jnp.float32, -lim_c, lim_c),
        "ln2_g": jnp.ones((1, C), jnp.float32),
        "ln2_b": jnp.zeros((1, C), jnp.float32),
        "w1": u(ks[4], (C, H), jnp.float32, -lim_c, lim_c),
        "b1": u(ks[5], (1, H), jnp.float32, -lim_c, lim_c),
        "w2": u(ks[6], (H, C), jnp.float32, -lim_h, lim_h),
        "b2": u(ks[7], (1, C), jnp.float32, -lim_h, lim_h),
    }


def block_reference(x, p, *, n_head):
    B, T, C = x.shape
    hd = C // n_head

    def ln(v, g, b):
        mu = v.mean(-1, keepdims=True)
        var = jnp.mean(jnp.square(v - mu), -1, keepdims=True)
        return (v - mu) * lax.rsqrt(var + 1e-5) * g + b

    xn = ln(x, p["ln1_g"][0], p["ln1_b"][0])
    qkv = xn @ p["wqkv"] + p["bqkv"][0]
    q, k, v = jnp.split(qkv, 3, axis=-1)

    def heads(t):
        return t.reshape(B, T, n_head, hd).transpose(0, 2, 1, 3)

    q, k, v = heads(q), heads(k), heads(v)
    s = jnp.einsum("bhtd,bhsd->bhts", q, k) / math.sqrt(hd)
    mask = jnp.tril(jnp.ones((T, T), bool))
    s = jnp.where(mask, s, -jnp.inf)
    a = jax.nn.softmax(s, axis=-1)
    y = jnp.einsum("bhts,bhsd->bhtd", a, v)
    y = y.transpose(0, 2, 1, 3).reshape(B, T, C)
    x = x + y @ p["wproj"] + p["bproj"][0]

    xn2 = ln(x, p["ln2_g"][0], p["ln2_b"][0])
    h = xn2 @ p["w1"] + p["b1"][0]
    h = 0.5 * h * (1.0 + lax.erf(h / math.sqrt(2.0)))
    return x + h @ p["w2"] + p["b2"][0]


if __name__ == "__main__":
    # config: n_embd=128 (lane-dense), n_head=4, dropout=0.0, bias=True
    # input : batch=2, seq=8
    B, T, C, n_head = 2, 8, 128, 4
    key = jax.random.PRNGKey(0)
    kx, kp = jax.random.split(key)
    x = jax.random.normal(kx, (B, T, C), jnp.float32)
    params = init_params(kp, C)

    out = block_forward(x, params, n_head=n_head)
    out = jax.block_until_ready(out)

    ref = block_reference(x, params, n_head=n_head)
    assert out.shape == (B, T, C)
    max_err = float(jnp.max(jnp.abs(out - ref)))
    # bf16 MXU inputs (f32 accumulate) in both kernels -> ~1e-2-level deviation.
    assert jnp.allclose(out, ref, atol=5e-2, rtol=5e-2), (
        f"mismatch vs reference, max abs err {max_err}")

    print("KERNEL_OK")
</pallas_src>

<mosaic_0001>
module attributes {stable_mosaic.version = 11 : i64} {
  func.func @_attn_block_kernel(%arg0: i32, %arg1: memref<1x8x128xf32, #tpu.memory_space<vmem>>, %arg2: memref<1x128xf32, #tpu.memory_space<vmem>>, %arg3: memref<1x128xf32, #tpu.memory_space<vmem>>, %arg4: memref<128x384xbf16, #tpu.memory_space<vmem>>, %arg5: memref<1x384xf32, #tpu.memory_space<vmem>>, %arg6: memref<128x128xbf16, #tpu.memory_space<vmem>>, %arg7: memref<1x128xf32, #tpu.memory_space<vmem>>, %arg8: memref<1x8x128xf32, #tpu.memory_space<vmem>>) attributes {dimension_semantics = [#tpu.dimension_semantics<parallel>], iteration_bounds = array<i64: 2>, scalar_prefetch = 0 : i64, scratch_operands = 0 : i64, tpu.core_type = #tpu.core_type<tc>, window_params = [{transform_indices = @transform_0, window_bounds = array<i64: 1, 8, 128>}, {pipeline_mode = #tpu.pipeline_mode<synchronous>, transform_indices = @transform_1, window_bounds = array<i64: 1, 128>}, {pipeline_mode = #tpu.pipeline_mode<synchronous>, transform_indices = @transform_2, window_bounds = array<i64: 1, 128>}, {pipeline_mode = #tpu.pipeline_mode<synchronous>, transform_indices = @transform_3, window_bounds = array<i64: 128, 384>}, {pipeline_mode = #tpu.pipeline_mode<synchronous>, transform_indices = @transform_4, window_bounds = array<i64: 1, 384>}, {pipeline_mode = #tpu.pipeline_mode<synchronous>, transform_indices = @transform_5, window_bounds = array<i64: 128, 128>}, {pipeline_mode = #tpu.pipeline_mode<synchronous>, transform_indices = @transform_6, window_bounds = array<i64: 1, 128>}, {transform_indices = @transform_7, window_bounds = array<i64: 1, 8, 128>}]} {
    %c0 = arith.constant 0 : index
    %c0_0 = arith.constant 0 : index
    %c0_1 = arith.constant 0 : index
    %0 = vector.load %arg1[%c0, %c0_0, %c0_1] : memref<1x8x128xf32, #tpu.memory_space<vmem>>, vector<1x8x128xf32>
    %1 = vector.shape_cast %0 : vector<1x8x128xf32> to vector<8x128xf32>
    %cst = arith.constant dense<0.000000e+00> : vector<8xf32>
    %2 = vector.multi_reduction <add>, %1, %cst [1] : vector<8x128xf32> to vector<8xf32>
    %3 = vector.shape_cast %2 : vector<8xf32> to vector<8x1xf32>
    %cst_2 = arith.constant 1.280000e+02 : f32
    %4 = vector.broadcast %cst_2 : f32 to vector<8x1xf32>
    %5 = arith.divf %3, %4 : vector<8x1xf32>
    %6 = vector.broadcast %5 : vector<8x1xf32> to vector<8x128xf32>
    %7 = arith.subf %1, %6 : vector<8x128xf32>
    %8 = arith.mulf %7, %7 : vector<8x128xf32>
    %cst_3 = arith.constant dense<0.000000e+00> : vector<8xf32>
    %9 = vector.multi_reduction <add>, %8, %cst_3 [1] : vector<8x128xf32> to vector<8xf32>
    %10 = vector.shape_cast %9 : vector<8xf32> to vector<8x1xf32>
    %cst_4 = arith.constant 1.280000e+02 : f32
    %11 = vector.broadcast %cst_4 : f32 to vector<8x1xf32>
    %12 = arith.divf %10, %11 : vector<8x1xf32>
    %13 = vector.broadcast %5 : vector<8x1xf32> to vector<8x128xf32>
    %14 = arith.subf %1, %13 : vector<8x128xf32>
    %cst_5 = arith.constant 9.99999974E-6 : f32
    %15 = vector.broadcast %cst_5 : f32 to vector<8x1xf32>
    %16 = arith.addf %12, %15 : vector<8x1xf32>
    %17 = math.rsqrt %16 : vector<8x1xf32>
    %18 = vector.broadcast %17 : vector<8x1xf32> to vector<8x128xf32>
    %19 = arith.mulf %14, %18 : vector<8x128xf32>
    %c0_6 = arith.constant 0 : index
    %c0_7 = arith.constant 0 : index
    %20 = vector.load %arg2[%c0_6, %c0_7] : memref<1x128xf32, #tpu.memory_space<vmem>>, vector<1x128xf32>
    %21 = vector.broadcast %20 : vector<1x128xf32> to vector<8x128xf32>
    %22 = arith.mulf %19, %21 : vector<8x128xf32>
    %c0_8 = arith.constant 0 : index
    %c0_9 = arith.constant 0 : index
    %23 = vector.load %arg3[%c0_8, %c0_9] : memref<1x128xf32, #tpu.memory_space<vmem>>, vector<1x128xf32>
    %24 = vector.broadcast %23 : vector<1x128xf32> to vector<8x128xf32>
    %25 = arith.addf %22, %24 : vector<8x128xf32>
    %26 = arith.truncf %25 : vector<8x128xf32> to vector<8x128xbf16>
    %c0_10 = arith.constant 0 : index
    %c0_11 = arith.constant 0 : index
    %27 = vector.load %arg4[%c0_10, %c0_11] : memref<128x384xbf16, #tpu.memory_space<vmem>>, vector<128x384xbf16>
    %cst_12 = arith.constant dense<0.000000e+00> : vector<8x384xf32>
    %28 = tpu.matmul %26, %27, %cst_12 {dimension_numbers = #tpu.dot_dimension_numbers<[1], [0], [0], [1], [0, 0, 1, 1], [], []>} : vector<8x128xbf16>, vector<128x384xbf16>, vector<8x384xf32> -> vector<8x384xf32>
    %c0_13 = arith.constant 0 : index
    %c0_14 = arith.constant 0 : index
    %29 = vector.load %arg5[%c0_13, %c0_14] : memref<1x384xf32, #tpu.memory_space<vmem>>, vector<1x384xf32>
    %30 = vector.broadcast %29 : vector<1x384xf32> to vector<8x384xf32>
    %31 = arith.addf %28, %30 : vector<8x384xf32>
    %32 = vector.shape_cast %31 : vector<8x384xf32> to vector<1x8x384xf32>
    %33 = tpu.iota {dimensions = array<i32: 0>} : vector<8x8xi32>
    %34 = tpu.iota {dimensions = array<i32: 1>} : vector<8x8xi32>
    %35 = arith.cmpi sge, %33, %34 : vector<8x8xi32>
    %c0_15 = arith.constant 0 : index
    %c0_16 = arith.constant 0 : index
    %36 = vector.load %arg6[%c0_15, %c0_16] : memref<128x128xbf16, #tpu.memory_space<vmem>>, vector<128x128xbf16>
    %cst_17 = arith.constant 0.000000e+00 : f32
    %37 = vector.broadcast %cst_17 : f32 to vector<8x128xf32>
    %38 = vector.extract_strided_slice %32 {offsets = [0, 0, 0], sizes = [1, 8, 32], strides = [1, 1, 1]} : vector<1x8x384xf32> to vector<1x8x32xf32>
    %39 = arith.truncf %38 : vector<1x8x32xf32> to vector<1x8x32xbf16>
    %40 = vector.extract_strided_slice %32 {offsets = [0, 0, 128], sizes = [1, 8, 32], strides = [1, 1, 1]} : vector<1x8x384xf32> to vector<1x8x32xf32>
    %41 = arith.truncf %40 : vector<1x8x32xf32> to vector<1x8x32xbf16>
    %42 = vector.extract_strided_slice %32 {offsets = [0, 0, 256], sizes = [1, 8, 32], strides = [1, 1, 1]} : vector<1x8x384xf32> to vector<1x8x32xf32>
    %43 = arith.truncf %42 : vector<1x8x32xf32> to vector<1x8x32xbf16>
    "tpu.trace_start"() <{level = 10 : i32, message = "bqd,bkd->bqk"}> : () -> ()
    %cst_18 = arith.constant dense<0.000000e+00> : vector<1x8x8xf32>
    %44 = tpu.matmul %39, %41, %cst_18 {dimension_numbers = #tpu.dot_dimension_numbers<[2], [2], [1], [1], [0, 0, 0, 1, 1, 1], [0], [0]>} : vector<1x8x32xbf16>, vector<1x8x32xbf16>, vector<1x8x8xf32> -> vector<1x8x8xf32>
    "tpu.trace_stop"() : () -> ()
    %cst_19 = arith.constant 0.176776692 : f32
    %45 = vector.broadcast %cst_19 : f32 to vector<1x8x8xf32>
    %46 = arith.mulf %44, %45 : vector<1x8x8xf32>
    %cst_20 = arith.constant -1.000000e+30 : f32
    %47 = vector.shape_cast %35 : vector<8x8xi1> to vector<1x8x8xi1>
    %48 = vector.broadcast %cst_20 : f32 to vector<1x8x8xf32>
    %49 = arith.select %47, %46, %48 : vector<1x8x8xi1>, vector<1x8x8xf32>
    %cst_21 = arith.constant dense<0xFF800000> : vector<1x8xf32>
    %50 = vector.multi_reduction <maximumf>, %49, %cst_21 [2] : vector<1x8x8xf32> to vector<1x8xf32>
    %51 = vector.shape_cast %50 : vector<1x8xf32> to vector<1x8x1xf32>
    %52 = vector.broadcast %51 : vector<1x8x1xf32> to vector<1x8x8xf32>
    %53 = arith.subf %49, %52 : vector<1x8x8xf32>
    %54 = math.exp %53 : vector<1x8x8xf32>
    %cst_22 = arith.constant dense<0.000000e+00> : vector<1x8xf32>
    %55 = vector.multi_reduction <add>, %54, %cst_22 [2] : vector<1x8x8xf32> to vector<1x8xf32>
    %56 = vector.shape_cast %55 : vector<1x8xf32> to vector<1x8x1xf32>
    %57 = tpu.reciprocal %56 {approx = true} : vector<1x8x1xf32> -> vector<1x8x1xf32>
    %58 = vector.broadcast %57 : vector<1x8x1xf32> to vector<1x8x8xf32>
    %59 = arith.mulf %54, %58 : vector<1x8x8xf32>
    %60 = arith.truncf %59 : vector<1x8x8xf32> to vector<1x8x8xbf16>
    "tpu.trace_start"() <{level = 10 : i32, message = "bqk,bkd->bqd"}> : () -> ()
    %cst_23 = arith.constant dense<0.000000e+00> : vector<1x8x32xf32>
    %61 = tpu.matmul %60, %43, %cst_23 {dimension_numbers = #tpu.dot_dimension_numbers<[2], [1], [1], [2], [0, 0, 0, 1, 1, 2], [0], [0]>} : vector<1x8x8xbf16>, vector<1x8x32xbf16>, vector<1x8x32xf32> -> vector<1x8x32xf32>
    "tpu.trace_stop"() : () -> ()
    %62 = vector.shape_cast %61 : vector<1x8x32xf32> to vector<8x32xf32>
    %63 = arith.truncf %62 : vector<8x32xf32> to vector<8x32xbf16>
    %64 = vector.extract_strided_slice %36 {offsets = [0, 0], sizes = [32, 128], strides = [1, 1]} : vector<128x128xbf16> to vector<32x128xbf16>
    %cst_24 = arith.constant dense<0.000000e+00> : vector<8x128xf32>
    %65 = tpu.matmul %63, %64, %cst_24 {dimension_numbers = #tpu.dot_dimension_numbers<[1], [0], [0], [1], [0, 0, 1, 1], [], []>} : vector<8x32xbf16>, vector<32x128xbf16>, vector<8x128xf32> -> vector<8x128xf32>
    %66 = arith.addf %37, %65 : vector<8x128xf32>
    %67 = vector.extract_strided_slice %32 {offsets = [0, 0, 32], sizes = [1, 8, 32], strides = [1, 1, 1]} : vector<1x8x384xf32> to vector<1x8x32xf32>
    %68 = arith.truncf %67 : vector<1x8x32xf32> to vector<1x8x32xbf16>
    %69 = vector.extract_strided_slice %32 {offsets = [0, 0, 160], sizes = [1, 8, 32], strides = [1, 1, 1]} : vector<1x8x384xf32> to vector<1x8x32xf32>
    %70 = arith.truncf %69 : vector<1x8x32xf32> to vector<1x8x32xbf16>
    %71 = vector.extract_strided_slice %32 {offsets = [0, 0, 288], sizes = [1, 8, 32], strides = [1, 1, 1]} : vector<1x8x384xf32> to vector<1x8x32xf32>
    %72 = arith.truncf %71 : vector<1x8x32xf32> to vector<1x8x32xbf16>
    "tpu.trace_start"() <{level = 10 : i32, message = "bqd,bkd->bqk"}> : () -> ()
    %cst_25 = arith.constant dense<0.000000e+00> : vector<1x8x8xf32>
    %73 = tpu.matmul %68, %70, %cst_25 {dimension_numbers = #tpu.dot_dimension_numbers<[2], [2], [1], [1], [0, 0, 0, 1, 1, 1], [0], [0]>} : vector<1x8x32xbf16>, vector<1x8x32xbf16>, vector<1x8x8xf32> -> vector<1x8x8xf32>
    "tpu.trace_stop"() : () -> ()
    %cst_26 = arith.constant 0.176776692 : f32
    %74 = vector.broadcast %cst_26 : f32 to vector<1x8x8xf32>
    %75 = arith.mulf %73, %74 : vector<1x8x8xf32>
    %cst_27 = arith.constant -1.000000e+30 : f32
    %76 = vector.shape_cast %35 : vector<8x8xi1> to vector<1x8x8xi1>
    %77 = vector.broadcast %cst_27 : f32 to vector<1x8x8xf32>
    %78 = arith.select %76, %75, %77 : vector<1x8x8xi1>, vector<1x8x8xf32>
    %cst_28 = arith.constant dense<0xFF800000> : vector<1x8xf32>
    %79 = vector.multi_reduction <maximumf>, %78, %cst_28 [2] : vector<1x8x8xf32> to vector<1x8xf32>
    %80 = vector.shape_cast %79 : vector<1x8xf32> to vector<1x8x1xf32>
    %81 = vector.broadcast %80 : vector<1x8x1xf32> to vector<1x8x8xf32>
    %82 = arith.subf %78, %81 : vector<1x8x8xf32>
    %83 = math.exp %82 : vector<1x8x8xf32>
    %cst_29 = arith.constant dense<0.000000e+00> : vector<1x8xf32>
    %84 = vector.multi_reduction <add>, %83, %cst_29 [2] : vector<1x8x8xf32> to vector<1x8xf32>
    %85 = vector.shape_cast %84 : vector<1x8xf32> to vector<1x8x1xf32>
    %86 = tpu.reciprocal %85 {approx = true} : vector<1x8x1xf32> -> vector<1x8x1xf32>
    %87 = vector.broadcast %86 : vector<1x8x1xf32> to vector<1x8x8xf32>
    %88 = arith.mulf %83, %87 : vector<1x8x8xf32>
    %89 = arith.truncf %88 : vector<1x8x8xf32> to vector<1x8x8xbf16>
    "tpu.trace_start"() <{level = 10 : i32, message = "bqk,bkd->bqd"}> : () -> ()
    %cst_30 = arith.constant dense<0.000000e+00> : vector<1x8x32xf32>
    %90 = tpu.matmul %89, %72, %cst_30 {dimension_numbers = #tpu.dot_dimension_numbers<[2], [1], [1], [2], [0, 0, 0, 1, 1, 2], [0], [0]>} : vector<1x8x8xbf16>, vector<1x8x32xbf16>, vector<1x8x32xf32> -> vector<1x8x32xf32>
    "tpu.trace_stop"() : () -> ()
    %91 = vector.shape_cast %90 : vector<1x8x32xf32> to vector<8x32xf32>
    %92 = arith.truncf %91 : vector<8x32xf32> to vector<8x32xbf16>
    %93 = vector.extract_strided_slice %36 {offsets = [32, 0], sizes = [32, 128], strides = [1, 1]} : vector<128x128xbf16> to vector<32x128xbf16>
    %cst_31 = arith.constant dense<0.000000e+00> : vector<8x128xf32>
    %94 = tpu.matmul %92, %93, %cst_31 {dimension_numbers = #tpu.dot_dimension_numbers<[1], [0], [0], [1], [0, 0, 1, 1], [], []>} : vector<8x32xbf16>, vector<32x128xbf16>, vector<8x128xf32> -> vector<8x128xf32>
    %95 = arith.addf %66, %94 : vector<8x128xf32>
    %96 = vector.extract_strided_slice %32 {offsets = [0, 0, 64], sizes = [1, 8, 32], strides = [1, 1, 1]} : vector<1x8x384xf32> to vector<1x8x32xf32>
    %97 = arith.truncf %96 : vector<1x8x32xf32> to vector<1x8x32xbf16>
    %98 = vector.extract_strided_slice %32 {offsets = [0, 0, 192], sizes = [1, 8, 32], strides = [1, 1, 1]} : vector<1x8x384xf32> to vector<1x8x32xf32>
    %99 = arith.truncf %98 : vector<1x8x32xf32> to vector<1x8x32xbf16>
    %100 = vector.extract_strided_slice %32 {offsets = [0, 0, 320], sizes = [1, 8, 32], strides = [1, 1, 1]} : vector<1x8x384xf32> to vector<1x8x32xf32>
    %101 = arith.truncf %100 : vector<1x8x32xf32> to vector<1x8x32xbf16>
    "tpu.trace_start"() <{level = 10 : i32, message = "bqd,bkd->bqk"}> : () -> ()
    %cst_32 = arith.constant dense<0.000000e+00> : vector<1x8x8xf32>
    %102 = tpu.matmul %97, %99, %cst_32 {dimension_numbers = #tpu.dot_dimension_numbers<[2], [2], [1], [1], [0, 0, 0, 1, 1, 1], [0], [0]>} : vector<1x8x32xbf16>, vector<1x8x32xbf16>, vector<1x8x8xf32> -> vector<1x8x8xf32>
    "tpu.trace_stop"() : () -> ()
    %cst_33 = arith.constant 0.176776692 : f32
    %103 = vector.broadcast %cst_33 : f32 to vector<1x8x8xf32>
    %104 = arith.mulf %102, %103 : vector<1x8x8xf32>
    %cst_34 = arith.constant -1.000000e+30 : f32
    %105 = vector.shape_cast %35 : vector<8x8xi1> to vector<1x8x8xi1>
    %106 = vector.broadcast %cst_34 : f32 to vector<1x8x8xf32>
    %107 = arith.select %105, %104, %106 : vector<1x8x8xi1>, vector<1x8x8xf32>
    %cst_35 = arith.constant dense<0xFF800000> : vector<1x8xf32>
    %108 = vector.multi_reduction <maximumf>, %107, %cst_35 [2] : vector<1x8x8xf32> to vector<1x8xf32>
    %109 = vector.shape_cast %108 : vector<1x8xf32> to vector<1x8x1xf32>
    %110 = vector.broadcast %109 : vector<1x8x1xf32> to vector<1x8x8xf32>
    %111 = arith.subf %107, %110 : vector<1x8x8xf32>
    %112 = math.exp %111 : vector<1x8x8xf32>
    %cst_36 = arith.constant dense<0.000000e+00> : vector<1x8xf32>
    %113 = vector.multi_reduction <add>, %112, %cst_36 [2] : vector<1x8x8xf32> to vector<1x8xf32>
    %114 = vector.shape_cast %113 : vector<1x8xf32> to vector<1x8x1xf32>
    %115 = tpu.reciprocal %114 {approx = true} : vector<1x8x1xf32> -> vector<1x8x1xf32>
    %116 = vector.broadcast %115 : vector<1x8x1xf32> to vector<1x8x8xf32>
    %117 = arith.mulf %112, %116 : vector<1x8x8xf32>
    %118 = arith.truncf %117 : vector<1x8x8xf32> to vector<1x8x8xbf16>
    "tpu.trace_start"() <{level = 10 : i32, message = "bqk,bkd->bqd"}> : () -> ()
    %cst_37 = arith.constant dense<0.000000e+00> : vector<1x8x32xf32>
    %119 = tpu.matmul %118, %101, %cst_37 {dimension_numbers = #tpu.dot_dimension_numbers<[2], [1], [1], [2], [0, 0, 0, 1, 1, 2], [0], [0]>} : vector<1x8x8xbf16>, vector<1x8x32xbf16>, vector<1x8x32xf32> -> vector<1x8x32xf32>
    "tpu.trace_stop"() : () -> ()
    %120 = vector.shape_cast %119 : vector<1x8x32xf32> to vector<8x32xf32>
    %121 = arith.truncf %120 : vector<8x32xf32> to vector<8x32xbf16>
    %122 = vector.extract_strided_slice %36 {offsets = [64, 0], sizes = [32, 128], strides = [1, 1]} : vector<128x128xbf16> to vector<32x128xbf16>
    %cst_38 = arith.constant dense<0.000000e+00> : vector<8x128xf32>
    %123 = tpu.matmul %121, %122, %cst_38 {dimension_numbers = #tpu.dot_dimension_numbers<[1], [0], [0], [1], [0, 0, 1, 1], [], []>} : vector<8x32xbf16>, vector<32x128xbf16>, vector<8x128xf32> -> vector<8x128xf32>
    %124 = arith.addf %95, %123 : vector<8x128xf32>
    %125 = vector.extract_strided_slice %32 {offsets = [0, 0, 96], sizes = [1, 8, 32], strides = [1, 1, 1]} : vector<1x8x384xf32> to vector<1x8x32xf32>
    %126 = arith.truncf %125 : vector<1x8x32xf32> to vector<1x8x32xbf16>
    %127 = vector.extract_strided_slice %32 {offsets = [0, 0, 224], sizes = [1, 8, 32], strides = [1, 1, 1]} : vector<1x8x384xf32> to vector<1x8x32xf32>
    %128 = arith.truncf %127 : vector<1x8x32xf32> to vector<1x8x32xbf16>
    %129 = vector.extract_strided_slice %32 {offsets = [0, 0, 352], sizes = [1, 8, 32], strides = [1, 1, 1]} : vector<1x8x384xf32> to vector<1x8x32xf32>
    %130 = arith.truncf %129 : vector<1x8x32xf32> to vector<1x8x32xbf16>
    "tpu.trace_start"() <{level = 10 : i32, message = "bqd,bkd->bqk"}> : () -> ()
    %cst_39 = arith.constant dense<0.000000e+00> : vector<1x8x8xf32>
    %131 = tpu.matmul %126, %128, %cst_39 {dimension_numbers = #tpu.dot_dimension_numbers<[2], [2], [1], [1], [0, 0, 0, 1, 1, 1], [0], [0]>} : vector<1x8x32xbf16>, vector<1x8x32xbf16>, vector<1x8x8xf32> -> vector<1x8x8xf32>
    "tpu.trace_stop"() : () -> ()
    %cst_40 = arith.constant 0.176776692 : f32
    %132 = vector.broadcast %cst_40 : f32 to vector<1x8x8xf32>
    %133 = arith.mulf %131, %132 : vector<1x8x8xf32>
    %cst_41 = arith.constant -1.000000e+30 : f32
    %134 = vector.shape_cast %35 : vector<8x8xi1> to vector<1x8x8xi1>
    %135 = vector.broadcast %cst_41 : f32 to vector<1x8x8xf32>
    %136 = arith.select %134, %133, %135 : vector<1x8x8xi1>, vector<1x8x8xf32>
    %cst_42 = arith.constant dense<0xFF800000> : vector<1x8xf32>
    %137 = vector.multi_reduction <maximumf>, %136, %cst_42 [2] : vector<1x8x8xf32> to vector<1x8xf32>
    %138 = vector.shape_cast %137 : vector<1x8xf32> to vector<1x8x1xf32>
    %139 = vector.broadcast %138 : vector<1x8x1xf32> to vector<1x8x8xf32>
    %140 = arith.subf %136, %139 : vector<1x8x8xf32>
    %141 = math.exp %140 : vector<1x8x8xf32>
    %cst_43 = arith.constant dense<0.000000e+00> : vector<1x8xf32>
    %142 = vector.multi_reduction <add>, %141, %cst_43 [2] : vector<1x8x8xf32> to vector<1x8xf32>
    %143 = vector.shape_cast %142 : vector<1x8xf32> to vector<1x8x1xf32>
    %144 = tpu.reciprocal %143 {approx = true} : vector<1x8x1xf32> -> vector<1x8x1xf32>
    %145 = vector.broadcast %144 : vector<1x8x1xf32> to vector<1x8x8xf32>
    %146 = arith.mulf %141, %145 : vector<1x8x8xf32>
    %147 = arith.truncf %146 : vector<1x8x8xf32> to vector<1x8x8xbf16>
    "tpu.trace_start"() <{level = 10 : i32, message = "bqk,bkd->bqd"}> : () -> ()
    %cst_44 = arith.constant dense<0.000000e+00> : vector<1x8x32xf32>
    %148 = tpu.matmul %147, %130, %cst_44 {dimension_numbers = #tpu.dot_dimension_numbers<[2], [1], [1], [2], [0, 0, 0, 1, 1, 2], [0], [0]>} : vector<1x8x8xbf16>, vector<1x8x32xbf16>, vector<1x8x32xf32> -> vector<1x8x32xf32>
    "tpu.trace_stop"() : () -> ()
    %149 = vector.shape_cast %148 : vector<1x8x32xf32> to vector<8x32xf32>
    %150 = arith.truncf %149 : vector<8x32xf32> to vector<8x32xbf16>
    %151 = vector.extract_strided_slice %36 {offsets = [96, 0], sizes = [32, 128], strides = [1, 1]} : vector<128x128xbf16> to vector<32x128xbf16>
    %cst_45 = arith.constant dense<0.000000e+00> : vector<8x128xf32>
    %152 = tpu.matmul %150, %151, %cst_45 {dimension_numbers = #tpu.dot_dimension_numbers<[1], [0], [0], [1], [0, 0, 1, 1], [], []>} : vector<8x32xbf16>, vector<32x128xbf16>, vector<8x128xf32> -> vector<8x128xf32>
    %153 = arith.addf %124, %152 : vector<8x128xf32>
    %154 = arith.addf %1, %153 : vector<8x128xf32>
    %c0_46 = arith.constant 0 : index
    %c0_47 = arith.constant 0 : index
    %155 = vector.load %arg7[%c0_46, %c0_47] : memref<1x128xf32, #tpu.memory_space<vmem>>, vector<1x128xf32>
    %156 = vector.broadcast %155 : vector<1x128xf32> to vector<8x128xf32>
    %157 = arith.addf %154, %156 : vector<8x128xf32>
    %158 = vector.shape_cast %157 : vector<8x128xf32> to vector<1x8x128xf32>
    %c0_48 = arith.constant 0 : index
    %c0_49 = arith.constant 0 : index
    %c0_50 = arith.constant 0 : index
    %159 = vector.load %arg8[%c0_48, %c0_49, %c0_50] : memref<1x8x128xf32, #tpu.memory_space<vmem>>, vector<1x8x128xf32>
    tpu.vector_store %arg8[%c0_48, %c0_49, %c0_50], %158 {strides = array<i32>} : memref<1x8x128xf32, #tpu.memory_space<vmem>>, vector<1x8x128xf32>,
    return
  }
  func.func @transform_0(%arg0: i32) -> (i32, i32, i32) {
    %c0_i32 = arith.constant 0 : i32
    %c0_i32_0 = arith.constant 0 : i32
    %c0_i32_1 = arith.constant 0 : i32
    return %arg0, %c0_i32, %c0_i32_0 : i32, i32, i32
  }
  func.func @transform_1(%arg0: i32) -> (i32, i32) {
    %c0_i32 = arith.constant 0 : i32
    %c0_i32_0 = arith.constant 0 : i32
    %c0_i32_1 = arith.constant 0 : i32
    return %c0_i32, %c0_i32_0 : i32, i32
  }
  func.func @transform_2(%arg0: i32) -> (i32, i32) {
    %c0_i32 = arith.constant 0 : i32
    %c0_i32_0 = arith.constant 0 : i32
    %c0_i32_1 = arith.constant 0 : i32
    return %c0_i32, %c0_i32_0 : i32, i32
  }
  func.func @transform_3(%arg0: i32) -> (i32, i32) {
    %c0_i32 = arith.constant 0 : i32
    %c0_i32_0 = arith.constant 0 : i32
    %c0_i32_1 = arith.constant 0 : i32
    return %c0_i32, %c0_i32_0 : i32, i32
  }
  func.func @transform_4(%arg0: i32) -> (i32, i32) {
    %c0_i32 = arith.constant 0 : i32
    %c0_i32_0 = arith.constant 0 : i32
    %c0_i32_1 = arith.constant 0 : i32
    return %c0_i32, %c0_i32_0 : i32, i32
  }
  func.func @transform_5(%arg0: i32) -> (i32, i32) {
    %c0_i32 = arith.constant 0 : i32
    %c0_i32_0 = arith.constant 0 : i32
    %c0_i32_1 = arith.constant 0 : i32
    return %c0_i32, %c0_i32_0 : i32, i32
  }
  func.func @transform_6(%arg0: i32) -> (i32, i32) {
    %c0_i32 = arith.constant 0 : i32
    %c0_i32_0 = arith.constant 0 : i32
    %c0_i32_1 = arith.constant 0 : i32
    return %c0_i32, %c0_i32_0 : i32, i32
  }
  func.func @transform_7(%arg0: i32) -> (i32, i32, i32) {
    %c0_i32 = arith.constant 0 : i32
    %c0_i32_0 = arith.constant 0 : i32
    %c0_i32_1 = arith.constant 0 : i32
    return %arg0, %c0_i32, %c0_i32_0 : i32, i32, i32
  }
}

</mosaic_0001>

<llo_original>
// kernel: tpu_custom_call.1
$region0: #{tpu_custom_call.1}
  #allocation0 [shape = 'u32[]', space=smem, size = 0x4, offset = 0x4, fixed_abs, tag = 'smem constant byte address 0x4 - core index']
  #allocation1 [shape = 'u32[144,128]{1,0:T(1,128)}', space=vmem, size = 0x12000, scoped, tag = 'internal scratch']
  %s0 = inlined_call_operand.hbm [shape: f32[2,8,128], index: 0, kind: input, shape index: {}]
  %s1 = inlined_call_operand.vmem [shape: f32[1,128], index: 1, kind: input, shape index: {}]
  %s2 = inlined_call_operand.vmem [shape: f32[1,128], index: 2, kind: input, shape index: {}]
  %s3 = inlined_call_operand.hbm [shape: bf16[128,384], index: 3, kind: input, shape index: {}]
  %s4 = inlined_call_operand.vmem [shape: f32[1,384], index: 4, kind: input, shape index: {}]
  %s5 = inlined_call_operand.hbm [shape: bf16[128,128], index: 5, kind: input, shape index: {}]
  %s6 = inlined_call_operand.vmem [shape: f32[1,128], index: 6, kind: input, shape index: {}]
  %s7 = inlined_call_operand.hbm [shape: f32[2,8,128], index: 7, kind: output, shape index: {}]
  %s8 = sld [smem:[#allocation0]]
  $region73: #{tpu_custom_call.1} parent=0
    _
  %s10 = ssub.s32 1, %s8
  %s11 = scalar_select 0, %s10, %s8
  $region1: #{tpu_custom_call.1} parent=0
    #allocation2 [shape = 'u8[8192]{0}', space=vmem, size = 0x2000, scoped, tag = 'input window, operand 0']
    #allocation3 [shape = 's32[2]{0}', space=sflag, size = 0x8, scoped, tag = 'scoped memory for tpu_custom_call.1']
    #allocation4 [shape = 's32[2]{0}', space=sflag, size = 0x8, scoped, tag = 'scoped memory for tpu_custom_call.1']
    #allocation5 [shape = 'u8[98304]{0}', space=vmem, size = 0x18000, scoped, tag = 'input window, operand 3, single buffered']
    #allocation6 [shape = 's32[1]{0}', space=sflag, size = 0x4, scoped, tag = 'scoped memory for tpu_custom_call.1']
    #allocation7 [shape = 'u8[32768]{0}', space=vmem, size = 0x8000, scoped, tag = 'input window, operand 5, single buffered']
    #allocation8 [shape = 'u8[8192]{0}', space=vmem, size = 0x2000, scoped, tag = 'output window, operand 0']
    %12 = vsyncpa [#allocation3], 0
    %s13 = scalar_lea.sflag [#allocation3], 1
    %14 = vsyncpa %s13, 0
    %15 = vsyncpa [#allocation6], 0
    %16 = vsyncpa [#allocation4], 0
    %s17 = scalar_lea.sflag [#allocation4], 1
    %18 = vsyncpa %s17, 0
    loop: start=0, step=1, limit=4
    $region2: #{tpu_custom_call.1} parent=1 // loop_pre_header
      _
    $region3: #{tpu_custom_call.1} parent=1 // loop_header
      %s20 = sphi 0, %s24
      %p21 = scmp.ge.s32.totalorder %s20, 4
      %s30 = sphi 0, %s32
      %s33 = sphi 0, %s30
      %s34 = sphi 0, %s33
      %s50 = sphi 0, %s34
      %s54 = sphi 0, %s54
      %s56 = sphi 0, %s54
      %s57 = sphi 0, %s56
      %s71 = sphi 0, %s57
      %s75 = sphi 0, %s75
      %s77 = sphi 0, %s75
      %s78 = sphi 0, %s77
      %s92 = sphi 0, %s78
      %s96 = sphi 0, %s96
      %s98 = sphi 0, %s96
      %s99 = sphi 0, %s98
      %s113 = sphi 0, %s99
      %s117 = sphi 0, %s117
      %s119 = sphi 0, %s117
      %s120 = sphi 0, %s119
      %s134 = sphi 0, %s120
      %s138 = sphi 0, %s138
      %s140 = sphi 0, %s138
      %s141 = sphi 0, %s140
      %s155 = sphi 0, %s141
      %s159 = sphi 0, %s159
      %s161 = sphi 0, %s159
      %s162 = sphi 0, %s161
      %s176 = sphi 0, %s162
      %s182 = sphi 0, %s184
      %s185 = sphi 0, %s182
      %s186 = sphi 0, %s185
      %s202 = sphi 0, %s186
    $region4: #{tpu_custom_call.1} parent=1 // loop_header_branch
      %23 = sbr.rel (%p21) target = $region8
    $region5: #{tpu_custom_call.1} parent=1 // loop_body
      %s25 = ssub.s32 %s20, 1
      %s26 = ssub.s32 %s20, 2
      %s27 = sadd.s32 %s20, 1
      %s28 = ssub.s32 %s20, %s27
      %p29 = scmp.eq.s32.totalorder %s28, 0
      %s31 = sadd.s32 %s30, 1
      %s32 = scalar_select %p29, %s30, %s31
      %p35 = pneg %p29
      %p36 = scmp.eq.s32.totalorder %s20, 1
      %p37 = por %p35, %p36
      %p38 = scmp.ne.s32.totalorder %s30, %s33
      %p39 = scmp.eq.s32.totalorder %s20, 0
      %p40 = por %p38, %p39
      %p41 = scmp.ne.s32.totalorder %s30, %s33
      %p42 = scmp.eq.s32.totalorder %s25, 1
      %p43 = por %p41, %p42
      %p44 = scmp.ne.s32.totalorder %s33, %s34
      %p45 = scmp.eq.s32.totalorder %s25, 0
      %p46 = por %p44, %p45
      %p47 = scmp.ne.s32.totalorder %s33, %s34
      %p48 = scmp.eq.s32.totalorder %s26, 1
      %p49 = por %p47, %p48
      %p51 = scmp.ne.s32.totalorder %s34, %s50
      %p52 = scmp.eq.s32.totalorder %s26, 0
      %p53 = por %p51, %p52
      %s55 = sadd.s32 %s54, 1
      %p58 = scmp.eq.s32.totalorder %s20, 1
      %p59 = scmp.ne.s32.totalorder %s54, %s56
      %p60 = scmp.eq.s32.totalorder %s20, 0
      %p61 = por %p59, %p60
      %p62 = scmp.ne.s32.totalorder %s54, %s56
      %p63 = scmp.eq.s32.totalorder %s25, 1
      %p64 = por %p62, %p63
      %p65 = scmp.ne.s32.totalorder %s56, %s57
      %p66 = scmp.eq.s32.totalorder %s25, 0
      %p67 = por %p65, %p66
      %p68 = scmp.ne.s32.totalorder %s56, %s57
      %p69 = scmp.eq.s32.totalorder %s26, 1
      %p70 = por %p68, %p69
      %p72 = scmp.ne.s32.totalorder %s57, %s71
      %p73 = scmp.eq.s32.totalorder %s26, 0
      %p74 = por %p72, %p73
      %s76 = sadd.s32 %s75, 1
      %p79 = scmp.eq.s32.totalorder %s20, 1
      %p80 = scmp.ne.s32.totalorder %s75, %s77
      %p81 = scmp.eq.s32.totalorder %s20, 0
      %p82 = por %p80, %p81
      %p83 = scmp.ne.s32.totalorder %s75, %s77
      %p84 = scmp.eq.s32.totalorder %s25, 1
      %p85 = por %p83, %p84
      %p86 = scmp.ne.s32.totalorder %s77, %s78
      %p87 = scmp.eq.s32.totalorder %s25, 0
      %p88 = por %p86, %p87
      %p89 = scmp.ne.s32.totalorder %s77, %s78
      %p90 = scmp.eq.s32.totalorder %s26, 1
      %p91 = por %p89, %p90
      %p93 = scmp.ne.s32.totalorder %s78, %s92
      %p94 = scmp.eq.s32.totalorder %s26, 0
      %p95 = por %p93, %p94
      %s97 = sadd.s32 %s96, 1
      %p100 = scmp.eq.s32.totalorder %s20, 1
      %p101 = scmp.ne.s32.totalorder %s96, %s98
      %p102 = scmp.eq.s32.totalorder %s20, 0
      %p103 = por %p101, %p102
      %p104 = scmp.ne.s32.totalorder %s96, %s98
      %p105 = scmp.eq.s32.totalorder %s25, 1
      %p106 = por %p104, %p105
      %p107 = scmp.ne.s32.totalorder %s98, %s99
      %p108 = scmp.eq.s32.totalorder %s25, 0
      %p109 = por %p107, %p108
      %p110 = scmp.ne.s32.totalorder %s98, %s99
      %p111 = scmp.eq.s32.totalorder %s26, 1
      %p112 = por %p110, %p111
      %p114 = scmp.ne.s32.totalorder %s99, %s113
      %p115 = scmp.eq.s32.totalorder %s26, 0
      %p116 = por %p114, %p115
      %s118 = sadd.s32 %s117, 1
      %p121 = scmp.eq.s32.totalorder %s20, 1
      %p122 = scmp.ne.s32.totalorder %s117, %s119
      %p123 = scmp.eq.s32.totalorder %s20, 0
      %p124 = por %p122, %p123
      %p125 = scmp.ne.s32.totalorder %s117, %s119
      %p126 = scmp.eq.s32.totalorder %s25, 1
      %p127 = por %p125, %p126
      %p128 = scmp.ne.s32.totalorder %s119, %s120
      %p129 = scmp.eq.s32.totalorder %s25, 0
      %p130 = por %p128, %p129
      %p131 = scmp.ne.s32.totalorder %s119, %s120
      %p132 = scmp.eq.s32.totalorder %s26, 1
      %p133 = por %p131, %p132
      %p135 = scmp.ne.s32.totalorder %s120, %s134
      %p136 = scmp.eq.s32.totalorder %s26, 0
      %p137 = por %p135, %p136
      %s139 = sadd.s32 %s138, 1
      %p142 = scmp.eq.s32.totalorder %s20, 1
      %p143 = scmp.ne.s32.totalorder %s138, %s140
      %p144 = scmp.eq.s32.totalorder %s20, 0
      %p145 = por %p143, %p144
      %p146 = scmp.ne.s32.totalorder %s138, %s140
      %p147 = scmp.eq.s32.totalorder %s25, 1
      %p148 = por %p146, %p147
      %p149 = scmp.ne.s32.totalorder %s140, %s141
      %p150 = scmp.eq.s32.totalorder %s25, 0
      %p151 = por %p149, %p150
      %p152 = scmp.ne.s32.totalorder %s140, %s141
      %p153 = scmp.eq.s32.totalorder %s26, 1
      %p154 = por %p152, %p153
      %p156 = scmp.ne.s32.totalorder %s141, %s155
      %p157 = scmp.eq.s32.totalorder %s26, 0
      %p158 = por %p156, %p157
      %s160 = sadd.s32 %s159, 1
      %p163 = scmp.eq.s32.totalorder %s20, 1
      %p164 = scmp.ne.s32.totalorder %s159, %s161
      %p165 = scmp.eq.s32.totalorder %s20, 0
      %p166 = por %p164, %p165
      %p167 = scmp.ne.s32.totalorder %s159, %s161
      %p168 = scmp.eq.s32.totalorder %s25, 1
      %p169 = por %p167, %p168
      %p170 = scmp.ne.s32.totalorder %s161, %s162
      %p171 = scmp.eq.s32.totalorder %s25, 0
      %p172 = por %p170, %p171
      %p173 = scmp.ne.s32.totalorder %s161, %s162
      %p174 = scmp.eq.s32.totalorder %s26, 1
      %p175 = por %p173, %p174
      %p177 = scmp.ne.s32.totalorder %s162, %s176
      %p178 = scmp.eq.s32.totalorder %s26, 0
      %p179 = por %p177, %p178
      %s180 = ssub.s32 %s20, %s27
      %p181 = scmp.eq.s32.totalorder %s180, 0
      %s183 = sadd.s32 %s182, 1
      %s184 = scalar_select %p181, %s182, %s183
      %p187 = pneg %p181
      %p188 = scmp.eq.s32.totalorder %s20, 1
      %p189 = por %p187, %p188
      %p190 = scmp.ne.s32.totalorder %s182, %s185
      %p191 = scmp.eq.s32.totalorder %s20, 0
      %p192 = por %p190, %p191
      %p193 = scmp.ne.s32.totalorder %s182, %s185
      %p194 = scmp.eq.s32.totalorder %s25, 1
      %p195 = por %p193, %p194
      %p196 = scmp.ne.s32.totalorder %s185, %s186
      %p197 = scmp.eq.s32.totalorder %s25, 0
      %p198 = por %p196, %p197
      %p199 = scmp.ne.s32.totalorder %s185, %s186
      %p200 = scmp.eq.s32.totalorder %s26, 1
      %p201 = por %p199, %p200
      %p203 = scmp.ne.s32.totalorder %s186, %s202
      %p204 = scmp.eq.s32.totalorder %s26, 0
      %p205 = por %p203, %p204
      %p206 = scmp.le.s32.totalorder 1, %s20
      %p207 = scmp.lt.s32.totalorder %s20, 3
      %p208 = pnand %p206, %p207
      %p209 = pneg %p208
      // Predicated region
      $region9: #{tpu_custom_call.1} parent=5 // pred_check
        _
      $region10: #{tpu_custom_call.1} parent=5 // pred_check_branch
        %211 = sbr.rel (%p208) target = $region12
      $region11: #{tpu_custom_call.1} parent=5 // pred_region
        %s212 = ssub.s32 %s20, 1
        // Predicated region
        $region13: #{tpu_custom_call.1} parent=11 // pred_check
          %p213 = pneg %p67
        $region14: #{tpu_custom_call.1} parent=11 // pred_check_branch
          %215 = sbr.rel (%p213) target = $region16
        $region15: #{tpu_custom_call.1} parent=11 // pred_region
          _
        $region16: #{tpu_custom_call.1} parent=11 // pred_fallthru
          _
        // Predicated region
        $region17: #{tpu_custom_call.1} parent=11 // pred_check
          %p216 = pneg %p88
        $region18: #{tpu_custom_call.1} parent=11 // pred_check_branch
          %218 = sbr.rel (%p216) target = $region20
        $region19: #{tpu_custom_call.1} parent=11 // pred_region
          _
        $region20: #{tpu_custom_call.1} parent=11 // pred_fallthru
          _
        // Predicated region
        $region21: #{tpu_custom_call.1} parent=11 // pred_check
          %p219 = pneg %p109
        $region22: #{tpu_custom_call.1} parent=11 // pred_check_branch
          %221 = sbr.rel (%p219) target = $region24
        $region23: #{tpu_custom_call.1} parent=11 // pred_region
          %s223 = ssub.s32 3072, 3072
          %224 = vsyncadd [#allocation6], %s223
          %s225 = sshll.u32 [#allocation5], 4
          %s226 = int_to_ptr.vmem [resolvable:$true] %s225
          %231 = dma.hbm_to_vmem [thread:$0]  %s3, 3072, %s226, [#allocation6], 192, 192, 12
        $region24: #{tpu_custom_call.1} parent=11 // pred_fallthru
          _
        // Predicated region
        $region25: #{tpu_custom_call.1} parent=11 // pred_check
          %p232 = pneg %p130
        $region26: #{tpu_custom_call.1} parent=11 // pred_check_branch
          %234 = sbr.rel (%p232) target = $region28
        $region27: #{tpu_custom_call.1} parent=11 // pred_region
          _
        $region28: #{tpu_custom_call.1} parent=11 // pred_fallthru
          _
        // Predicated region
        $region29: #{tpu_custom_call.1} parent=11 // pred_check
          %p235 = pneg %p151
        $region30: #{tpu_custom_call.1} parent=11 // pred_check_branch
          %237 = sbr.rel (%p235) target = $region32
        $region31: #{tpu_custom_call.1} parent=11 // pred_region
          %s239 = ssub.s32 1024, 1024
          %240 = vsyncadd [#allocation6], %s239
          %s241 = sshll.u32 [#allocation7], 4
          %s242 = int_to_ptr.vmem [resolvable:$true] %s241
          %247 = dma.hbm_to_vmem [thread:$0]  %s5, 1024, %s242, [#allocation6], 64, 64, 4
        $region32: #{tpu_custom_call.1} parent=11 // pred_fallthru
          _
        // Predicated region
        $region33: #{tpu_custom_call.1} parent=11 // pred_check
          %p248 = pneg %p172
        $region34: #{tpu_custom_call.1} parent=11 // pred_check_branch
          %250 = sbr.rel (%p248) target = $region36
        $region35: #{tpu_custom_call.1} parent=11 // pred_region
          _
        $region36: #{tpu_custom_call.1} parent=11 // pred_fallthru
          _
      $region12: #{tpu_custom_call.1} parent=5 // pred_fallthru
        _
      %p251 = scmp.lt.s32.totalorder %s20, 2
      // Predicated region
      $region37: #{tpu_custom_call.1} parent=5 // pred_check
        %p252 = pneg %p251
      $region38: #{tpu_custom_call.1} parent=5 // pred_check_branch
        %254 = sbr.rel (%p252) target = $region40
      $region39: #{tpu_custom_call.1} parent=5 // pred_region
        // Predicated region
        $region41: #{tpu_custom_call.1} parent=39 // pred_check
          %p255 = pneg %p40
        $region42: #{tpu_custom_call.1} parent=39 // pred_check_branch
          %257 = sbr.rel (%p255) target = $region44
        $region43: #{tpu_custom_call.1} parent=39 // pred_region
          %s258 = sand.u32 %s30, 1
          %s259 = scalar_lea.sflag [#allocation3], %s258
          %s260 = sand.u32 %s30, 1
          %s261 = smul.addr %s260, 8
          %s262 = scalar_lea.vmem [#allocation2], %s261
          %s264 = ssub.s32 128, 128
          %265 = vsyncadd %s259, %s264
          %s266 = smul.addr %s20, 128
          %s267 = scalar_lea.hbm %s0, %s266
          %s269 = sshll.u32 %s262, 4
          %s270 = int_to_ptr.vmem [resolvable:$true] %s269
          %272 = dma.hbm_to_vmem [thread:$0]  %s267, 128, %s270, %s259
        $region44: #{tpu_custom_call.1} parent=39 // pred_fallthru
          _
      $region40: #{tpu_custom_call.1} parent=5 // pred_fallthru
        _
      %p273 = scmp.le.s32.totalorder 1, %s20
      %p274 = scmp.lt.s32.totalorder %s20, 3
      %p275 = pnand %p273, %p274
      %p276 = pneg %p275
      // Predicated region
      $region45: #{tpu_custom_call.1} parent=5 // pred_check
        _
      $region46: #{tpu_custom_call.1} parent=5 // pred_check_branch
        %278 = sbr.rel (%p275) target = $region48
      $region47: #{tpu_custom_call.1} parent=5 // pred_region
        %s279 = ssub.s32 %s20, 1
        %s280 = sand.u32 %s33, 1
        %s281 = scalar_lea.sflag [#allocation3], %s280
        %s282 = sand.u32 %s33, 1
        %s283 = smul.addr %s282, 8
        %s284 = scalar_lea.vmem [#allocation2], %s283
        // Predicated region
        $region49: #{tpu_custom_call.1} parent=47 // pred_check
          %p285 = pneg %p46
        $region50: #{tpu_custom_call.1} parent=47 // pred_check_branch
          %287 = sbr.rel (%p285) target = $region52
        $region51: #{tpu_custom_call.1} parent=47 // pred_region
          %288 = dma.done %s281, 128
        $region52: #{tpu_custom_call.1} parent=47 // pred_fallthru
          _
        // Predicated region
        $region53: #{tpu_custom_call.1} parent=47 // pred_check
          %p289 = pneg %p109
        $region54: #{tpu_custom_call.1} parent=47 // pred_check_branch
          %291 = sbr.rel (%p289) target = $region56
        $region55: #{tpu_custom_call.1} parent=47 // pred_region
          %292 = dma.done [#allocation6], 3072
        $region56: #{tpu_custom_call.1} parent=47 // pred_fallthru
          _
        // Predicated region
        $region57: #{tpu_custom_call.1} parent=47 // pred_check
          %p293 = pneg %p151
        $region58: #{tpu_custom_call.1} parent=47 // pred_check_branch
          %295 = sbr.rel (%p293) target = $region60
        $region59: #{tpu_custom_call.1} parent=47 // pred_region
          %296 = dma.done [#allocation6], 1024
        $region60: #{tpu_custom_call.1} parent=47 // pred_fallthru
          _
        %s297 = sand.u32 %s33, 1
        %s298 = scalar_lea.sflag [#allocation3], %s297
        %s299 = sand.u32 %s33, 1
        %s300 = smul.addr %s299, 8
        %s301 = scalar_lea.vmem [#allocation2], %s300
        %p302 = pneg %p46
        %p303 = pneg %p43
        %p304 = pneg %p67
        %p305 = pneg %p64
        %p306 = pneg %p88
        %p307 = pneg %p85
        %p308 = pneg %p109
        %p309 = pneg %p106
        %p310 = pneg %p130
        %p311 = pneg %p127
        %p312 = pneg %p151
        %p313 = pneg %p148
        %p314 = pneg %p172
        %p315 = pneg %p169
        %p316 = pneg %p198
        %p317 = pneg %p195
        %s318 = sand.u32 %s185, 1
        %s319 = scalar_lea.sflag [#allocation4], %s318
        %s320 = sand.u32 %s185, 1
        %s321 = smul.addr %s320, 8
        %s322 = scalar_lea.vmem [#allocation8], %s321
        %v324 = vld [vmem:[%s284] sm:$0xff]
        %325 = vadd.xlane.f32.xlu0 %v324
        %v326 = vpop.xlane.xlu0 %325
        %v327 = vrcp.pop 128.0
        %v328 = vmul.f32 %v326, %v327
        %v329 = vsub.f32 %v324, %v328
        %v330 = vmul.f32 %v329, %v329
        %331 = vadd.xlane.f32.xlu0 %v330
        %v332 = vpop.xlane.xlu0 %331
        %v333 = vmul.f32 %v332, %v327
        %v334 = vadd.f32 %v333, 1e-05
        %v335 = vrsqrt.pop %v334
        %v336 = vmul.f32 %v329, %v335
        %v337 = vld [vmem:[%s1] sm:$0x1]
        %v339 = vlaneseq
        %v340 = vshrl.u32 %v339, 7
        %v341 = vsub.s32 0, %v340
        %v342 = vrot.slane %v337, %v341
        %v344 = vmul.f32 %v336, %v342
        %v345 = vld [vmem:[%s2] sm:$0x1]
        %v347 = vlaneseq
        %v348 = vshrl.u32 %v347, 7
        %v349 = vsub.s32 0, %v348
        %v350 = vrot.slane %v345, %v349
        %v352 = vadd.f32 %v344, %v350
        %v353 = vpack.c.bf16 %v352, %v352
        %v354 = vld [vmem:[#allocation5] sm:$0xff]
        %v355 = vld [vmem:[#allocation5 + $0x8] sm:$0xf]
        %v356 = vld [vmem:[#allocation5 + $0xc] sm:$0xff]
        %v357 = vld [vmem:[#allocation5 + $0x14] sm:$0xf]
        %v358 = vld [vmem:[#allocation5 + $0x18] sm:$0xff]
        %v359 = vld [vmem:[#allocation5 + $0x20] sm:$0xf]
        %v360 = vld [vmem:[#allocation5 + $0x24] sm:$0xff]
        %v361 = vld [vmem:[#allocation5 + $0x2c] sm:$0xf]
        %v362 = vld [vmem:[#allocation5 + $0x30] sm:$0xff]
        %v363 = vld [vmem:[#allocation5 + $0x38] sm:$0xf]
        %v364 = vld [vmem:[#allocation5 + $0x3c] sm:$0xff]
        %v365 = vld [vmem:[#allocation5 + $0x44] sm:$0xf]
        %v366 = vld [vmem:[#allocation5 + $0x48] sm:$0xff]
        %v367 = vld [vmem:[#allocation5 + $0x50] sm:$0xf]
        %v368 = vld [vmem:[#allocation5 + $0x54] sm:$0xff]
        %v369 = vld [vmem:[#allocation5 + $0x5c] sm:$0xf]
        %v370 = vld [vmem:[#allocation5 + $0x60] sm:$0xff]
        %v371 = vld [vmem:[#allocation5 + $0x68] sm:$0xf]
        %v372 = vld [vmem:[#allocation5 + $0x6c] sm:$0xff]
        %v373 = vld [vmem:[#allocation5 + $0x74] sm:$0xf]
        %v374 = vld [vmem:[#allocation5 + $0x78] sm:$0xff]
        %v375 = vld [vmem:[#allocation5 + $0x80] sm:$0xf]
        %v376 = vld [vmem:[#allocation5 + $0x84] sm:$0xff]
        %v377 = vld [vmem:[#allocation5 + $0x8c] sm:$0xf]
        %v378 = vld [vmem:[#allocation5 + $0x90] sm:$0xff]
        %v379 = vld [vmem:[#allocation5 + $0x98] sm:$0xf]
        %v380 = vld [vmem:[#allocation5 + $0x9c] sm:$0xff]
        %v381 = vld [vmem:[#allocation5 + $0xa4] sm:$0xf]
        %v382 = vld [vmem:[#allocation5 + $0xa8] sm:$0xff]
        %v383 = vld [vmem:[#allocation5 + $0xb0] sm:$0xf]
        %v384 = vld [vmem:[#allocation5 + $0xb4] sm:$0xff]
        %v385 = vld [vmem:[#allocation5 + $0xbc] sm:$0xf]
        %v386 = vld [vmem:[%s4] sm:$0x7]
        %v388 = vlaneseq
        %v389 = vshrl.u32 %v388, 7
        %v390 = vsub.s32 0, %v389
        %v391 = vrot.slane %v386, %v390
        %v392 = vlaneseq
        %v393 = vshrl.u32 %v392, 7
        %v394 = vsub.s32 1, %v393
        %v395 = vrot.slane %v386, %v394
        %v396 = vlaneseq
        %v397 = vshrl.u32 %v396, 7
        %v398 = vsub.s32 2, %v397
        %v399 = vrot.slane %v386, %v398
        %v435 = vunpack.c.l.b16 %v354
        %v436 = vunpack.c.h.b16 %v354
        %v437 = vunpack.c.l.b16 %v355
        %v438 = vunpack.c.l.b16 %v356
        %v439 = vunpack.c.h.b16 %v356
        %v440 = vunpack.c.l.b16 %v357
        %v441 = vunpack.c.l.b16 %v358
        %v442 = vunpack.c.h.b16 %v358
        %v443 = vunpack.c.l.b16 %v359
        %v444 = vunpack.c.l.b16 %v360
        %v445 = vunpack.c.h.b16 %v360
        %v446 = vunpack.c.l.b16 %v361
        %v447 = vunpack.c.l.b16 %v362
        %v448 = vunpack.c.h.b16 %v362
        %v449 = vunpack.c.l.b16 %v363
        %v450 = vunpack.c.l.b16 %v364
        %v451 = vunpack.c.h.b16 %v364
        %v452 = vunpack.c.l.b16 %v365
        %v453 = vunpack.c.l.b16 %v366
        %v454 = vunpack.c.h.b16 %v366
        %v455 = vunpack.c.l.b16 %v367
        %v456 = vunpack.c.l.b16 %v368
        %v457 = vunpack.c.h.b16 %v368
        %v458 = vunpack.c.l.b16 %v369
        %v459 = vunpack.c.l.b16 %v370
        %v460 = vunpack.c.h.b16 %v370
        %v461 = vunpack.c.l.b16 %v371
        %v462 = vunpack.c.l.b16 %v372
        %v463 = vunpack.c.h.b16 %v372
        %v464 = vunpack.c.l.b16 %v373
        %v465 = vunpack.c.l.b16 %v374
        %v466 = vunpack.c.h.b16 %v374
        %v467 = vunpack.c.l.b16 %v375
        %v468 = vunpack.c.l.b16 %v376
        %v469 = vunpack.c.h.b16 %v376
        %v470 = vunpack.c.l.b16 %v377
        %v471 = vunpack.c.l.b16 %v378
        %v472 = vunpack.c.h.b16 %v378
        %v473 = vunpack.c.l.b16 %v379
        %v474 = vunpack.c.l.b16 %v380
        %v475 = vunpack.c.h.b16 %v380
        %v476 = vunpack.c.l.b16 %v381
        %v477 = vunpack.c.l.b16 %v382
        %v478 = vunpack.c.h.b16 %v382
        %v479 = vunpack.c.l.b16 %v383
        %v480 = vunpack.c.l.b16 %v384
        %v481 = vunpack.c.h.b16 %v384
        %v482 = vunpack.c.l.b16 %v385
        %v483 = vpack.c.b16 %v438, %v435
        %v484 = vpack.c.b16 %v439, %v436
        %v485 = vpack.c.b16 %v440, %v437
        %v486 = vpack.c.b16 %v444, %v441
        %v487 = vpack.c.b16 %v445, %v442
        %v488 = vpack.c.b16 %v446, %v443
        %v489 = vpack.c.b16 %v450, %v447
        %v490 = vpack.c.b16 %v451, %v448
        %v491 = vpack.c.b16 %v452, %v449
        %v492 = vpack.c.b16 %v456, %v453
        %v493 = vpack.c.b16 %v457, %v454
        %v494 = vpack.c.b16 %v458, %v455
        %v495 = vpack.c.b16 %v462, %v459
        %v496 = vpack.c.b16 %v463, %v460
        %v497 = vpack.c.b16 %v464, %v461
        %v498 = vpack.c.b16 %v468, %v465
        %v499 = vpack.c.b16 %v469, %v466
        %v500 = vpack.c.b16 %v470, %v467
        %v501 = vpack.c.b16 %v474, %v471
        %v502 = vpack.c.b16 %v475, %v472
        %v503 = vpack.c.b16 %v476, %v473
        %v504 = vpack.c.b16 %v480, %v477
        %v505 = vpack.c.b16 %v481, %v478
        %v506 = vpack.c.b16 %v482, %v479
        %531 = vmatprep.subr.bf16.mxu0 %v505
        %532 = vmatpush1.bf16.msra.mxu0 %v504
        %533 = vmatprep.subr.bf16.mxu0 %v502
        %534 = vmatpush1.bf16.msra.mxu0 %v501
        %535 = vmatprep.subr.bf16.mxu0 %v499
        %536 = vmatpush1.bf16.msra.mxu0 %v498
        %537 = vmatprep.subr.bf16.mxu0 %v496
        %538 = vmatpush1.bf16.msra.mxu0 %v495
        %539 = vmatprep.subr.bf16.mxu0 %v493
        %540 = vmatpush1.bf16.msra.mxu0 %v492
        %541 = vmatprep.subr.bf16.mxu0 %v490
        %542 = vmatpush1.bf16.msra.mxu0 %v489
        %543 = vmatprep.subr.bf16.mxu0 %v487
        %544 = vmatpush1.bf16.msra.mxu0 %v486
        %545 = vmatprep.subr.bf16.mxu0 %v484
        %546 = vmatpush1.bf16.msra.mxu0 %v483
        %547 = vmatprep.subr.bf16.mxu0 0
        %548 = vmatpush2.bf16.msra.mxu0 0
        %549 = vmatprep.subr.bf16.mxu0 0
        %550 = vmatpush2.bf16.msra.mxu0 0
        %551 = vmatprep.subr.bf16.mxu0 0
        %552 = vmatpush2.bf16.msra.mxu0 0
        %553 = vmatprep.subr.bf16.mxu0 0
        %554 = vmatpush2.bf16.msra.mxu0 0
        %555 = vmatprep.subr.bf16.mxu0 0
        %556 = vmatpush2.bf16.msra.mxu0 0
        %557 = vmatprep.subr.bf16.mxu0 0
        %558 = vmatpush2.bf16.msra.mxu0 0
        %559 = vmatprep.subr.bf16.mxu0 0
        %560 = vmatpush2.bf16.msra.mxu0 0
        %561 = vmatprep.subr.bf16.mxu0 0
        %562 = vmatpush2.bf16.msra.mxu0 0
        %563 = vmatprep.mubr.bf16.mxu0 0
        %564 = vmatmul.mubr.bf16.gmra.mxu0 %v353
        %v565 = vpop.f32.mrf.mxu0
        %v566 = vadd.f32 %v391, %v565
        %v567 = vpop.f32.mrf.mxu0
        %v568 = vadd.f32 %v395, %v567
        %v569 = vpop.f32.mrf.mxu0
        %v570 = vpop.f32.mrf.mxu0
        %571 = vdwg.mxu0
        %572 = vmatprep.subr.bf16.mxu0 0
        %573 = vmatpush1.bf16.msra.mxu0 %v506
        %574 = vmatprep.subr.bf16.mxu0 0
        %575 = vmatpush1.bf16.msra.mxu0 %v503
        %576 = vmatprep.subr.bf16.mxu0 0
        %577 = vmatpush1.bf16.msra.mxu0 %v500
        %578 = vmatprep.subr.bf16.mxu0 0
        %579 = vmatpush1.bf16.msra.mxu0 %v497
        %580 = vmatprep.subr.bf16.mxu0 0
        %581 = vmatpush1.bf16.msra.mxu0 %v494
        %582 = vmatprep.subr.bf16.mxu0 0
        %583 = vmatpush1.bf16.msra.mxu0 %v491
        %584 = vmatprep.subr.bf16.mxu0 0
        %585 = vmatpush1.bf16.msra.mxu0 %v488
        %586 = vmatprep.subr.bf16.mxu0 0
        %587 = vmatpush1.bf16.msra.mxu0 %v485
        %588 = vmatprep.subr.bf16.mxu0 0
        %589 = vmatpush2.bf16.msra.mxu0 0
        %590 = vmatprep.subr.bf16.mxu0 0
        %591 = vmatpush2.bf16.msra.mxu0 0
        %592 = vmatprep.subr.bf16.mxu0 0
        %593 = vmatpush2.bf16.msra.mxu0 0
        %594 = vmatprep.subr.bf16.mxu0 0
        %595 = vmatpush2.bf16.msra.mxu0 0
        %596 = vmatprep.subr.bf16.mxu0 0
        %597 = vmatpush2.bf16.msra.mxu0 0
        %598 = vmatprep.subr.bf16.mxu0 0
        %599 = vmatpush2.bf16.msra.mxu0 0
        %600 = vmatprep.subr.bf16.mxu0 0
        %601 = vmatpush2.bf16.msra.mxu0 0
        %602 = vmatprep.subr.bf16.mxu0 0
        %603 = vmatpush2.bf16.msra.mxu0 0
        %604 = vmatprep.mubr.bf16.mxu0 0
        %605 = vmatmul.mubr.bf16.gmra.mxu0 %v353
        %v606 = vpop.f32.mrf.mxu0
        %v607 = vadd.f32 %v399, %v606
        %v608 = vpop.f32.mrf.mxu0
        %v609 = vpop.f32.mrf.mxu0
        %v610 = vpop.f32.mrf.mxu0
        %611 = vdwg.mxu0
        %v612 = vlaneseq
        %v613 = vshrl.u32 %v612, 7
        %v614 = vlaneseq
        %v615 = vand.u32 %v614, 127
        %vm616 = vcmp.ge.s32.totalorder %v613, %v615
        %v617 = vld [vmem:[#allocation7] sm:$0xf]
        %v618 = vld [vmem:[#allocation7 + $0x4] sm:$0xf]
        %v619 = vld [vmem:[#allocation7 + $0x8] sm:$0xf]
        %v620 = vld [vmem:[#allocation7 + $0xc] sm:$0xf]
        %v621 = vld [vmem:[#allocation7 + $0x10] sm:$0xf]
        %v622 = vld [vmem:[#allocation7 + $0x14] sm:$0xf]
        %v623 = vld [vmem:[#allocation7 + $0x18] sm:$0xf]
        %v624 = vld [vmem:[#allocation7 + $0x1c] sm:$0xf]
        %v625 = vld [vmem:[#allocation7 + $0x20] sm:$0xf]
        %v626 = vld [vmem:[#allocation7 + $0x24] sm:$0xf]
        %v627 = vld [vmem:[#allocation7 + $0x28] sm:$0xf]
        %v628 = vld [vmem:[#allocation7 + $0x2c] sm:$0xf]
        %v629 = vld [vmem:[#allocation7 + $0x30] sm:$0xf]
        %v630 = vld [vmem:[#allocation7 + $0x34] sm:$0xf]
        %v631 = vld [vmem:[#allocation7 + $0x38] sm:$0xf]
        %v632 = vld [vmem:[#allocation7 + $0x3c] sm:$0xf]
        %v633 = vpack.c.bf16 %v566, %v566
        %v634 = vpack.c.bf16 %v568, %v568
        %v635 = vpack.c.bf16 %v607, %v607
        %vm636 = vcmask 261120
        %v638 = vsel %vm636, %v633, 0
        %v641 = vsel %vm636, %v634, 0
        %643 = vmatprep.subr.bf16.mxu0 0
        %644 = vmatpush1.bf16.xpose.msra.mxu0 0
        %645 = vmatprep.subr.bf16.mxu0 0
        %646 = vmatpush1.bf16.xpose.msra.mxu0 0
        %647 = vmatprep.subr.bf16.mxu0 0
        %648 = vmatpush1.bf16.xpose.msra.mxu0 0
        %649 = vmatprep.subr.bf16.mxu0 0
        %650 = vmatpush1.bf16.xpose.msra.mxu0 0
        %651 = vmatprep.subr.bf16.mxu0 0
        %652 = vmatpush1.bf16.xpose.msra.mxu0 0
        %653 = vmatprep.subr.bf16.mxu0 0
        %654 = vmatpush1.bf16.xpose.msra.mxu0 0
        %655 = vmatprep.subr.bf16.mxu0 0
        %656 = vmatpush1.bf16.xpose.msra.mxu0 0
        %657 = vmatprep.subr.bf16.mxu0 0
        %658 = vmatpush1.bf16.xpose.msra.mxu0 %v641
        %659 = vmatprep.subr.bf16.mxu0 0
        %660 = vmatpush2.bf16.xpose.msra.mxu0 0
        %661 = vmatprep.subr.bf16.mxu0 0
        %662 = vmatpush2.bf16.xpose.msra.mxu0 0
        %663 = vmatprep.subr.bf16.mxu0 0
        %664 = vmatpush2.bf16.xpose.msra.mxu0 0
        %665 = vmatprep.subr.bf16.mxu0 0
        %666 = vmatpush2.bf16.xpose.msra.mxu0 0
        %667 = vmatprep.subr.bf16.mxu0 0
        %668 = vmatpush2.bf16.xpose.msra.mxu0 0
        %669 = vmatprep.subr.bf16.mxu0 0
        %670 = vmatpush2.bf16.xpose.msra.mxu0 0
        %671 = vmatprep.subr.bf16.mxu0 0
        %672 = vmatpush2.bf16.xpose.msra.mxu0 0
        %673 = vmatprep.subr.bf16.mxu0 0
        %674 = vmatpush2.bf16.xpose.msra.mxu0 0
        %675 = vmatprep.mubr.bf16.mxu0 0
        %676 = vmatmul.mubr.bf16.gmra.mxu0 %v638
        %v677 = vpop.f32.mrf.mxu0
        %v678 = vadd.f32 0.0, %v677
        %v679 = vpop.f32.mrf.mxu0
        %v680 = vpop.f32.mrf.mxu0
        %v681 = vpop.f32.mrf.mxu0
        %682 = vdwg.mxu0
        %v683 = vmul.f32 %v678, 0.17677669
        %v684 = vsel %vm616, %v683, -1e+30
        %vm685 = vcmask 64512
        %v686 = vsel %vm685, %v684, -inf
        %687 = vmax.xlane.f32.xlu0 %v686
        %v688 = vpop.xlane.xlu0 %687
        %v689 = vsub.f32 %v684, %v688
        %v690 = vmul.f32 %v689, 1.442695
        %v691 = vpow.pop %v690
        %v692 = vsel %vm685, %v691, 0.0
        %693 = vadd.xlane.f32.xlu0 %v692
        %v694 = vpop.xlane.xlu0 %693
        %v695 = vrcp.pop %v694
        %v696 = vmul.f32 %v691, %v695
        %v697 = vpack.c.bf16 %v696, %v696
        %v699 = vsel %vm685, %v697, 0
        %vm701 = vcmask 1043456
        %v703 = vsel %vm701, %v635, 0
        %705 = vmatprep.subr.bf16.mxu0 0
        %706 = vmatpush1.bf16.msra.mxu0 0
        %707 = vmatprep.subr.bf16.mxu0 0
        %708 = vmatpush1.bf16.msra.mxu0 0
        %709 = vmatprep.subr.bf16.mxu0 0
        %710 = vmatpush1.bf16.msra.mxu0 0
        %711 = vmatprep.subr.bf16.mxu0 0
        %712 = vmatpush1.bf16.msra.mxu0 0
        %713 = vmatprep.subr.bf16.mxu0 0
        %714 = vmatpush1.bf16.msra.mxu0 0
        %715 = vmatprep.subr.bf16.mxu0 0
        %716 = vmatpush1.bf16.msra.mxu0 0
        %717 = vmatprep.subr.bf16.mxu0 0
        %718 = vmatpush1.bf16.msra.mxu0 0
        %719 = vmatprep.subr.bf16.mxu0 0
        %720 = vmatpush1.bf16.msra.mxu0 %v703
        %721 = vmatprep.subr.bf16.mxu0 0
        %722 = vmatpush2.bf16.msra.mxu0 0
        %723 = vmatprep.subr.bf16.mxu0 0
        %724 = vmatpush2.bf16.msra.mxu0 0
        %725 = vmatprep.subr.bf16.mxu0 0
        %726 = vmatpush2.bf16.msra.mxu0 0
        %727 = vmatprep.subr.bf16.mxu0 0
        %728 = vmatpush2.bf16.msra.mxu0 0
        %729 = vmatprep.subr.bf16.mxu0 0
        %730 = vmatpush2.bf16.msra.mxu0 0
        %731 = vmatprep.subr.bf16.mxu0 0
        %732 = vmatpush2.bf16.msra.mxu0 0
        %733 = vmatprep.subr.bf16.mxu0 0
        %734 = vmatpush2.bf16.msra.mxu0 0
        %735 = vmatprep.subr.bf16.mxu0 0
        %736 = vmatpush2.bf16.msra.mxu0 0
        %737 = vmatprep.mubr.bf16.mxu0 0
        %738 = vmatmul.mubr.bf16.gmra.mxu0 %v699
        %v739 = vpop.f32.mrf.mxu0
        %v740 = vadd.f32 0.0, %v739
        %v741 = vpop.f32.mrf.mxu0
        %v742 = vpop.f32.mrf.mxu0
        %v743 = vpop.f32.mrf.mxu0
        %744 = vdwg.mxu0
        %v745 = vpack.c.bf16 %v740, %v740
        %747 = vrot.lane.b32.xlu0 %v633, 96
        %v748 = vpop.permute.xlu0 %747
        %750 = vrot.lane.b32.xlu0 %v634, 96
        %v751 = vpop.permute.xlu0 %750
        %v753 = vsel %vm636, %v748, 0
        %v756 = vsel %vm636, %v751, 0
        %758 = vmatprep.subr.bf16.mxu0 0
        %759 = vmatpush1.bf16.xpose.msra.mxu0 0
        %760 = vmatprep.subr.bf16.mxu0 0
        %761 = vmatpush1.bf16.xpose.msra.mxu0 0
        %762 = vmatprep.subr.bf16.mxu0 0
        %763 = vmatpush1.bf16.xpose.msra.mxu0 0
        %764 = vmatprep.subr.bf16.mxu0 0
        %765 = vmatpush1.bf16.xpose.msra.mxu0 0
        %766 = vmatprep.subr.bf16.mxu0 0
        %767 = vmatpush1.bf16.xpose.msra.mxu0 0
        %768 = vmatprep.subr.bf16.mxu0 0
        %769 = vmatpush1.bf16.xpose.msra.mxu0 0
        %770 = vmatprep.subr.bf16.mxu0 0
        %771 = vmatpush1.bf16.xpose.msra.mxu0 0
        %772 = vmatprep.subr.bf16.mxu0 0
        %773 = vmatpush1.bf16.xpose.msra.mxu0 %v756
        %774 = vmatprep.subr.bf16.mxu0 0
        %775 = vmatpush2.bf16.xpose.msra.mxu0 0
        %776 = vmatprep.subr.bf16.mxu0 0
        %777 = vmatpush2.bf16.xpose.msra.mxu0 0
        %778 = vmatprep.subr.bf16.mxu0 0
        %779 = vmatpush2.bf16.xpose.msra.mxu0 0
        %780 = vmatprep.subr.bf16.mxu0 0
        %781 = vmatpush2.bf16.xpose.msra.mxu0 0
        %782 = vmatprep.subr.bf16.mxu0 0
        %783 = vmatpush2.bf16.xpose.msra.mxu0 0
        %784 = vmatprep.subr.bf16.mxu0 0
        %785 = vmatpush2.bf16.xpose.msra.mxu0 0
        %786 = vmatprep.subr.bf16.mxu0 0
        %787 = vmatpush2.bf16.xpose.msra.mxu0 0
        %788 = vmatprep.subr.bf16.mxu0 0
        %789 = vmatpush2.bf16.xpose.msra.mxu0 0
        %790 = vmatprep.mubr.bf16.mxu0 0
        %791 = vmatmul.mubr.bf16.gmra.mxu0 %v753
        %v792 = vpop.f32.mrf.mxu0
        %v793 = vadd.f32 0.0, %v792
        %v794 = vpop.f32.mrf.mxu0
        %v795 = vpop.f32.mrf.mxu0
        %v796 = vpop.f32.mrf.mxu0
        %797 = vdwg.mxu0
        %v798 = vmul.f32 %v793, 0.17677669
        %v799 = vsel %vm616, %v798, -1e+30
        %v800 = vsel %vm685, %v799, -inf
        %801 = vmax.xlane.f32.xlu0 %v800
        %v802 = vpop.xlane.xlu0 %801
        %v803 = vsub.f32 %v799, %v802
        %v804 = vmul.f32 %v803, 1.442695
        %v805 = vpow.pop %v804
        %v806 = vsel %vm685, %v805, 0.0
        %807 = vadd.xlane.f32.xlu0 %v806
        %v808 = vpop.xlane.xlu0 %807
        %v809 = vrcp.pop %v808
        %v810 = vmul.f32 %v805, %v809
        %v811 = vpack.c.bf16 %v810, %v810
        %813 = vrot.lane.b32.xlu0 %v635, 96
        %v814 = vpop.permute.xlu0 %813
        %v816 = vsel %vm685, %v811, 0
        %v819 = vsel %vm701, %v814, 0
        %821 = vmatprep.subr.bf16.mxu0 0
        %822 = vmatpush1.bf16.msra.mxu0 0
        %823 = vmatprep.subr.bf16.mxu0 0
        %824 = vmatpush1.bf16.msra.mxu0 0
        %825 = vmatprep.subr.bf16.mxu0 0
        %826 = vmatpush1.bf16.msra.mxu0 0
        %827 = vmatprep.subr.bf16.mxu0 0
        %828 = vmatpush1.bf16.msra.mxu0 0
        %829 = vmatprep.subr.bf16.mxu0 0
        %830 = vmatpush1.bf16.msra.mxu0 0
        %831 = vmatprep.subr.bf16.mxu0 0
        %832 = vmatpush1.bf16.msra.mxu0 0
        %833 = vmatprep.subr.bf16.mxu0 0
        %834 = vmatpush1.bf16.msra.mxu0 0
        %835 = vmatprep.subr.bf16.mxu0 0
        %836 = vmatpush1.bf16.msra.mxu0 %v819
        %837 = vmatprep.subr.bf16.mxu0 0
        %838 = vmatpush2.bf16.msra.mxu0 0
        %839 = vmatprep.subr.bf16.mxu0 0
        %840 = vmatpush2.bf16.msra.mxu0 0
        %841 = vmatprep.subr.bf16.mxu0 0
        %842 = vmatpush2.bf16.msra.mxu0 0
        %843 = vmatprep.subr.bf16.mxu0 0
        %844 = vmatpush2.bf16.msra.mxu0 0
        %845 = vmatprep.subr.bf16.mxu0 0
        %846 = vmatpush2.bf16.msra.mxu0 0
        %847 = vmatprep.subr.bf16.mxu0 0
        %848 = vmatpush2.bf16.msra.mxu0 0
        %849 = vmatprep.subr.bf16.mxu0 0
        %850 = vmatpush2.bf16.msra.mxu0 0
        %851 = vmatprep.subr.bf16.mxu0 0
        %852 = vmatpush2.bf16.msra.mxu0 0
        %853 = vmatprep.mubr.bf16.mxu0 0
        %854 = vmatmul.mubr.bf16.gmra.mxu0 %v816
        %v855 = vpop.f32.mrf.mxu0
        %v856 = vadd.f32 0.0, %v855
        %v857 = vpop.f32.mrf.mxu0
        %v858 = vpop.f32.mrf.mxu0
        %v859 = vpop.f32.mrf.mxu0
        %860 = vdwg.mxu0
        %v861 = vpack.c.bf16 %v856, %v856
        %v866 = vunpack.c.l.b16 %v621
        %v867 = vunpack.c.l.b16 %v622
        %v868 = vunpack.c.l.b16 %v623
        %v869 = vunpack.c.l.b16 %v624
        %v870 = vpack.c.b16 %v867, %v866
        %v871 = vpack.c.b16 %v869, %v868
        %v875 = vsel %vm636, %v861, 0
        %877 = vmatprep.subr.bf16.mxu0 0
        %878 = vmatpush1.bf16.msra.mxu0 0
        %879 = vmatprep.subr.bf16.mxu0 0
        %880 = vmatpush1.bf16.msra.mxu0 0
        %881 = vmatprep.subr.bf16.mxu0 0
        %882 = vmatpush1.bf16.msra.mxu0 0
        %883 = vmatprep.subr.bf16.mxu0 0
        %884 = vmatpush1.bf16.msra.mxu0 0
        %885 = vmatprep.subr.bf16.mxu0 0
        %886 = vmatpush1.bf16.msra.mxu0 0
        %887 = vmatprep.subr.bf16.mxu0 0
        %888 = vmatpush1.bf16.msra.mxu0 0
        %889 = vmatprep.subr.bf16.mxu0 0
        %890 = vmatpush1.bf16.msra.mxu0 %v871
        %891 = vmatprep.subr.bf16.mxu0 0
        %892 = vmatpush1.bf16.msra.mxu0 %v870
        %893 = vmatprep.subr.bf16.mxu0 0
        %894 = vmatpush2.bf16.msra.mxu0 0
        %895 = vmatprep.subr.bf16.mxu0 0
        %896 = vmatpush2.bf16.msra.mxu0 0
        %897 = vmatprep.subr.bf16.mxu0 0
        %898 = vmatpush2.bf16.msra.mxu0 0
        %899 = vmatprep.subr.bf16.mxu0 0
        %900 = vmatpush2.bf16.msra.mxu0 0
        %901 = vmatprep.subr.bf16.mxu0 0
        %902 = vmatpush2.bf16.msra.mxu0 0
        %903 = vmatprep.subr.bf16.mxu0 0
        %904 = vmatpush2.bf16.msra.mxu0 0
        %905 = vmatprep.subr.bf16.mxu0 0
        %906 = vmatpush2.bf16.msra.mxu0 0
        %907 = vmatprep.subr.bf16.mxu0 0
        %908 = vmatpush2.bf16.msra.mxu0 0
        %909 = vmatprep.mubr.bf16.mxu0 0
        %910 = vmatmul.mubr.bf16.gmra.mxu0 %v875
        %v911 = vpop.f32.mrf.mxu0
        %v912 = vadd.f32 0.0, %v911
        %v913 = vpop.f32.mrf.mxu0
        %v914 = vpop.f32.mrf.mxu0
        %v915 = vpop.f32.mrf.mxu0
        %916 = vdwg.mxu0
        %v921 = vunpack.c.l.b16 %v617
        %v922 = vunpack.c.l.b16 %v618
        %v923 = vunpack.c.l.b16 %v619
        %v924 = vunpack.c.l.b16 %v620
        %v925 = vpack.c.b16 %v922, %v921
        %v926 = vpack.c.b16 %v924, %v923
        %v930 = vsel %vm636, %v745, 0
        %932 = vmatprep.subr.bf16.mxu0 0
        %933 = vmatpush1.bf16.msra.mxu0 0
        %934 = vmatprep.subr.bf16.mxu0 0
        %935 = vmatpush1.bf16.msra.mxu0 0
        %936 = vmatprep.subr.bf16.mxu0 0
        %937 = vmatpush1.bf16.msra.mxu0 0
        %938 = vmatprep.subr.bf16.mxu0 0
        %939 = vmatpush1.bf16.msra.mxu0 0
        %940 = vmatprep.subr.bf16.mxu0 0
        %941 = vmatpush1.bf16.msra.mxu0 0
        %942 = vmatprep.subr.bf16.mxu0 0
        %943 = vmatpush1.bf16.msra.mxu0 0
        %944 = vmatprep.subr.bf16.mxu0 0
        %945 = vmatpush1.bf16.msra.mxu0 %v926
        %946 = vmatprep.subr.bf16.mxu0 0
        %947 = vmatpush1.bf16.msra.mxu0 %v925
        %948 = vmatprep.subr.bf16.mxu0 0
        %949 = vmatpush2.bf16.msra.mxu0 0
        %950 = vmatprep.subr.bf16.mxu0 0
        %951 = vmatpush2.bf16.msra.mxu0 0
        %952 = vmatprep.subr.bf16.mxu0 0
        %953 = vmatpush2.bf16.msra.mxu0 0
        %954 = vmatprep.subr.bf16.mxu0 0
        %955 = vmatpush2.bf16.msra.mxu0 0
        %956 = vmatprep.subr.bf16.mxu0 0
        %957 = vmatpush2.bf16.msra.mxu0 0
        %958 = vmatprep.subr.bf16.mxu0 0
        %959 = vmatpush2.bf16.msra.mxu0 0
        %960 = vmatprep.subr.bf16.mxu0 0
        %961 = vmatpush2.bf16.msra.mxu0 0
        %962 = vmatprep.subr.bf16.mxu0 0
        %963 = vmatpush2.bf16.msra.mxu0 0
        %964 = vmatprep.mubr.bf16.mxu0 0
        %965 = vmatmul.mubr.bf16.gmra.mxu0 %v930
        %v966 = vpop.f32.mrf.mxu0
        %v967 = vadd.f32 %v912, %v966
        %v968 = vpop.f32.mrf.mxu0
        %v969 = vpop.f32.mrf.mxu0
        %v970 = vpop.f32.mrf.mxu0
        %971 = vdwg.mxu0
        %972 = vrot.lane.b32.xlu0 %v633, 64
        %v973 = vpop.permute.xlu0 %972
        %974 = vrot.lane.b32.xlu0 %v634, 64
        %v975 = vpop.permute.xlu0 %974
        %v977 = vsel %vm636, %v973, 0
        %v980 = vsel %vm636, %v975, 0
        %982 = vmatprep.subr.bf16.mxu0 0
        %983 = vmatpush1.bf16.xpose.msra.mxu0 0
        %984 = vmatprep.subr.bf16.mxu0 0
        %985 = vmatpush1.bf16.xpose.msra.mxu0 0
        %986 = vmatprep.subr.bf16.mxu0 0
        %987 = vmatpush1.bf16.xpose.msra.mxu0 0
        %988 = vmatprep.subr.bf16.mxu0 0
        %989 = vmatpush1.bf16.xpose.msra.mxu0 0
        %990 = vmatprep.subr.bf16.mxu0 0
        %991 = vmatpush1.bf16.xpose.msra.mxu0 0
        %992 = vmatprep.subr.bf16.mxu0 0
        %993 = vmatpush1.bf16.xpose.msra.mxu0 0
        %994 = vmatprep.subr.bf16.mxu0 0
        %995 = vmatpush1.bf16.xpose.msra.mxu0 0
        %996 = vmatprep.subr.bf16.mxu0 0
        %997 = vmatpush1.bf16.xpose.msra.mxu0 %v980
        %998 = vmatprep.subr.bf16.mxu0 0
        %999 = vmatpush2.bf16.xpose.msra.mxu0 0
        %1000 = vmatprep.subr.bf16.mxu0 0
        %1001 = vmatpush2.bf16.xpose.msra.mxu0 0
        %1002 = vmatprep.subr.bf16.mxu0 0
        %1003 = vmatpush2.bf16.xpose.msra.mxu0 0
        %1004 = vmatprep.subr.bf16.mxu0 0
        %1005 = vmatpush2.bf16.xpose.msra.mxu0 0
        %1006 = vmatprep.subr.bf16.mxu0 0
        %1007 = vmatpush2.bf16.xpose.msra.mxu0 0
        %1008 = vmatprep.subr.bf16.mxu0 0
        %1009 = vmatpush2.bf16.xpose.msra.mxu0 0
        %1010 = vmatprep.subr.bf16.mxu0 0
        %1011 = vmatpush2.bf16.xpose.msra.mxu0 0
        %1012 = vmatprep.subr.bf16.mxu0 0
        %1013 = vmatpush2.bf16.xpose.msra.mxu0 0
        %1014 = vmatprep.mubr.bf16.mxu0 0
        %1015 = vmatmul.mubr.bf16.gmra.mxu0 %v977
        %v1016 = vpop.f32.mrf.mxu0
        %v1017 = vadd.f32 0.0, %v1016
        %v1018 = vpop.f32.mrf.mxu0
        %v1019 = vpop.f32.mrf.mxu0
        %v1020 = vpop.f32.mrf.mxu0
        %1021 = vdwg.mxu0
        %v1022 = vmul.f32 %v1017, 0.17677669
        %v1023 = vsel %vm616, %v1022, -1e+30
        %v1024 = vsel %vm685, %v1023, -inf
        %1025 = vmax.xlane.f32.xlu0 %v1024
        %v1026 = vpop.xlane.xlu0 %1025
        %v1027 = vsub.f32 %v1023, %v1026
        %v1028 = vmul.f32 %v1027, 1.442695
        %v1029 = vpow.pop %v1028
        %v1030 = vsel %vm685, %v1029, 0.0
        %1031 = vadd.xlane.f32.xlu0 %v1030
        %v1032 = vpop.xlane.xlu0 %1031
        %v1033 = vrcp.pop %v1032
        %v1034 = vmul.f32 %v1029, %v1033
        %v1035 = vpack.c.bf16 %v1034, %v1034
        %1036 = vrot.lane.b32.xlu0 %v635, 64
        %v1037 = vpop.permute.xlu0 %1036
        %v1039 = vsel %vm685, %v1035, 0
        %v1042 = vsel %vm701, %v1037, 0
        %1044 = vmatprep.subr.bf16.mxu0 0
        %1045 = vmatpush1.bf16.msra.mxu0 0
        %1046 = vmatprep.subr.bf16.mxu0 0
        %1047 = vmatpush1.bf16.msra.mxu0 0
        %1048 = vmatprep.subr.bf16.mxu0 0
        %1049 = vmatpush1.bf16.msra.mxu0 0
        %1050 = vmatprep.subr.bf16.mxu0 0
        %1051 = vmatpush1.bf16.msra.mxu0 0
        %1052 = vmatprep.subr.bf16.mxu0 0
        %1053 = vmatpush1.bf16.msra.mxu0 0
        %1054 = vmatprep.subr.bf16.mxu0 0
        %1055 = vmatpush1.bf16.msra.mxu0 0
        %1056 = vmatprep.subr.bf16.mxu0 0
        %1057 = vmatpush1.bf16.msra.mxu0 0
        %1058 = vmatprep.subr.bf16.mxu0 0
        %1059 = vmatpush1.bf16.msra.mxu0 %v1042
        %1060 = vmatprep.subr.bf16.mxu0 0
        %1061 = vmatpush2.bf16.msra.mxu0 0
        %1062 = vmatprep.subr.bf16.mxu0 0
        %1063 = vmatpush2.bf16.msra.mxu0 0
        %1064 = vmatprep.subr.bf16.mxu0 0
        %1065 = vmatpush2.bf16.msra.mxu0 0
        %1066 = vmatprep.subr.bf16.mxu0 0
        %1067 = vmatpush2.bf16.msra.mxu0 0
        %1068 = vmatprep.subr.bf16.mxu0 0
        %1069 = vmatpush2.bf16.msra.mxu0 0
        %1070 = vmatprep.subr.bf16.mxu0 0
        %1071 = vmatpush2.bf16.msra.mxu0 0
        %1072 = vmatprep.subr.bf16.mxu0 0
        %1073 = vmatpush2.bf16.msra.mxu0 0
        %1074 = vmatprep.subr.bf16.mxu0 0
        %1075 = vmatpush2.bf16.msra.mxu0 0
        %1076 = vmatprep.mubr.bf16.mxu0 0
        %1077 = vmatmul.mubr.bf16.gmra.mxu0 %v1039
        %v1078 = vpop.f32.mrf.mxu0
        %v1079 = vadd.f32 0.0, %v1078
        %v1080 = vpop.f32.mrf.mxu0
        %v1081 = vpop.f32.mrf.mxu0
        %v1082 = vpop.f32.mrf.mxu0
        %1083 = vdwg.mxu0
        %v1084 = vpack.c.bf16 %v1079, %v1079
        %v1089 = vunpack.c.l.b16 %v625
        %v1090 = vunpack.c.l.b16 %v626
        %v1091 = vunpack.c.l.b16 %v627
        %v1092 = vunpack.c.l.b16 %v628
        %v1093 = vpack.c.b16 %v1090, %v1089
        %v1094 = vpack.c.b16 %v1092, %v1091
        %v1098 = vsel %vm636, %v1084, 0
        %1100 = vmatprep.subr.bf16.mxu0 0
        %1101 = vmatpush1.bf16.msra.mxu0 0
        %1102 = vmatprep.subr.bf16.mxu0 0
        %1103 = vmatpush1.bf16.msra.mxu0 0
        %1104 = vmatprep.subr.bf16.mxu0 0
        %1105 = vmatpush1.bf16.msra.mxu0 0
        %1106 = vmatprep.subr.bf16.mxu0 0
        %1107 = vmatpush1.bf16.msra.mxu0 0
        %1108 = vmatprep.subr.bf16.mxu0 0
        %1109 = vmatpush1.bf16.msra.mxu0 0
        %1110 = vmatprep.subr.bf16.mxu0 0
        %1111 = vmatpush1.bf16.msra.mxu0 0
        %1112 = vmatprep.subr.bf16.mxu0 0
        %1113 = vmatpush1.bf16.msra.mxu0 %v1094
        %1114 = vmatprep.subr.bf16.mxu0 0
        %1115 = vmatpush1.bf16.msra.mxu0 %v1093
        %1116 = vmatprep.subr.bf16.mxu0 0
        %1117 = vmatpush2.bf16.msra.mxu0 0
        %1118 = vmatprep.subr.bf16.mxu0 0
        %1119 = vmatpush2.bf16.msra.mxu0 0
        %1120 = vmatprep.subr.bf16.mxu0 0
        %1121 = vmatpush2.bf16.msra.mxu0 0
        %1122 = vmatprep.subr.bf16.mxu0 0
        %1123 = vmatpush2.bf16.msra.mxu0 0
        %1124 = vmatprep.subr.bf16.mxu0 0
        %1125 = vmatpush2.bf16.msra.mxu0 0
        %1126 = vmatprep.subr.bf16.mxu0 0
        %1127 = vmatpush2.bf16.msra.mxu0 0
        %1128 = vmatprep.subr.bf16.mxu0 0
        %1129 = vmatpush2.bf16.msra.mxu0 0
        %1130 = vmatprep.subr.bf16.mxu0 0
        %1131 = vmatpush2.bf16.msra.mxu0 0
        %1132 = vmatprep.mubr.bf16.mxu0 0
        %1133 = vmatmul.mubr.bf16.gmra.mxu0 %v1098
        %v1134 = vpop.f32.mrf.mxu0
        %v1135 = vadd.f32 0.0, %v1134
        %v1136 = vpop.f32.mrf.mxu0
        %v1137 = vpop.f32.mrf.mxu0
        %v1138 = vpop.f32.mrf.mxu0
        %1139 = vdwg.mxu0
        %v1140 = vadd.f32 %v967, %v1135
        %1141 = vrot.lane.b32.xlu0 %v633, 32
        %v1142 = vpop.permute.xlu0 %1141
        %1143 = vrot.lane.b32.xlu0 %v634, 32
        %v1144 = vpop.permute.xlu0 %1143
        %v1146 = vsel %vm636, %v1142, 0
        %v1149 = vsel %vm636, %v1144, 0
        %1151 = vmatprep.subr.bf16.mxu0 0
        %1152 = vmatpush1.bf16.xpose.msra.mxu0 0
        %1153 = vmatprep.subr.bf16.mxu0 0
        %1154 = vmatpush1.bf16.xpose.msra.mxu0 0
        %1155 = vmatprep.subr.bf16.mxu0 0
        %1156 = vmatpush1.bf16.xpose.msra.mxu0 0
        %1157 = vmatprep.subr.bf16.mxu0 0
        %1158 = vmatpush1.bf16.xpose.msra.mxu0 0
        %1159 = vmatprep.subr.bf16.mxu0 0
        %1160 = vmatpush1.bf16.xpose.msra.mxu0 0
        %1161 = vmatprep.subr.bf16.mxu0 0
        %1162 = vmatpush1.bf16.xpose.msra.mxu0 0
        %1163 = vmatprep.subr.bf16.mxu0 0
        %1164 = vmatpush1.bf16.xpose.msra.mxu0 0
        %1165 = vmatprep.subr.bf16.mxu0 0
        %1166 = vmatpush1.bf16.xpose.msra.mxu0 %v1149
        %1167 = vmatprep.subr.bf16.mxu0 0
        %1168 = vmatpush2.bf16.xpose.msra.mxu0 0
        %1169 = vmatprep.subr.bf16.mxu0 0
        %1170 = vmatpush2.bf16.xpose.msra.mxu0 0
        %1171 = vmatprep.subr.bf16.mxu0 0
        %1172 = vmatpush2.bf16.xpose.msra.mxu0 0
        %1173 = vmatprep.subr.bf16.mxu0 0
        %1174 = vmatpush2.bf16.xpose.msra.mxu0 0
        %1175 = vmatprep.subr.bf16.mxu0 0
        %1176 = vmatpush2.bf16.xpose.msra.mxu0 0
        %1177 = vmatprep.subr.bf16.mxu0 0
        %1178 = vmatpush2.bf16.xpose.msra.mxu0 0
        %1179 = vmatprep.subr.bf16.mxu0 0
        %1180 = vmatpush2.bf16.xpose.msra.mxu0 0
        %1181 = vmatprep.subr.bf16.mxu0 0
        %1182 = vmatpush2.bf16.xpose.msra.mxu0 0
        %1183 = vmatprep.mubr.bf16.mxu0 0
        %1184 = vmatmul.mubr.bf16.gmra.mxu0 %v1146
        %v1185 = vpop.f32.mrf.mxu0
        %v1186 = vadd.f32 0.0, %v1185
        %v1187 = vpop.f32.mrf.mxu0
        %v1188 = vpop.f32.mrf.mxu0
        %v1189 = vpop.f32.mrf.mxu0
        %1190 = vdwg.mxu0
        %v1191 = vmul.f32 %v1186, 0.17677669
        %v1192 = vsel %vm616, %v1191, -1e+30
        %v1193 = vsel %vm685, %v1192, -inf
        %1194 = vmax.xlane.f32.xlu0 %v1193
        %v1195 = vpop.xlane.xlu0 %1194
        %v1196 = vsub.f32 %v1192, %v1195
        %v1197 = vmul.f32 %v1196, 1.442695
        %v1198 = vpow.pop %v1197
        %v1199 = vsel %vm685, %v1198, 0.0
        %1200 = vadd.xlane.f32.xlu0 %v1199
        %v1201 = vpop.xlane.xlu0 %1200
        %v1202 = vrcp.pop %v1201
        %v1203 = vmul.f32 %v1198, %v1202
        %v1204 = vpack.c.bf16 %v1203, %v1203
        %1205 = vrot.lane.b32.xlu0 %v635, 32
        %v1206 = vpop.permute.xlu0 %1205
        %v1208 = vsel %vm685, %v1204, 0
        %v1211 = vsel %vm701, %v1206, 0
        %1213 = vmatprep.subr.bf16.mxu0 0
        %1214 = vmatpush1.bf16.msra.mxu0 0
        %1215 = vmatprep.subr.bf16.mxu0 0
        %1216 = vmatpush1.bf16.msra.mxu0 0
        %1217 = vmatprep.subr.bf16.mxu0 0
        %1218 = vmatpush1.bf16.msra.mxu0 0
        %1219 = vmatprep.subr.bf16.mxu0 0
        %1220 = vmatpush1.bf16.msra.mxu0 0
        %1221 = vmatprep.subr.bf16.mxu0 0
        %1222 = vmatpush1.bf16.msra.mxu0 0
        %1223 = vmatprep.subr.bf16.mxu0 0
        %1224 = vmatpush1.bf16.msra.mxu0 0
        %1225 = vmatprep.subr.bf16.mxu0 0
        %1226 = vmatpush1.bf16.msra.mxu0 0
        %1227 = vmatprep.subr.bf16.mxu0 0
        %1228 = vmatpush1.bf16.msra.mxu0 %v1211
        %1229 = vmatprep.subr.bf16.mxu0 0
        %1230 = vmatpush2.bf16.msra.mxu0 0
        %1231 = vmatprep.subr.bf16.mxu0 0
        %1232 = vmatpush2.bf16.msra.mxu0 0
        %1233 = vmatprep.subr.bf16.mxu0 0
        %1234 = vmatpush2.bf16.msra.mxu0 0
        %1235 = vmatprep.subr.bf16.mxu0 0
        %1236 = vmatpush2.bf16.msra.mxu0 0
        %1237 = vmatprep.subr.bf16.mxu0 0
        %1238 = vmatpush2.bf16.msra.mxu0 0
        %1239 = vmatprep.subr.bf16.mxu0 0
        %1240 = vmatpush2.bf16.msra.mxu0 0
        %1241 = vmatprep.subr.bf16.mxu0 0
        %1242 = vmatpush2.bf16.msra.mxu0 0
        %1243 = vmatprep.subr.bf16.mxu0 0
        %1244 = vmatpush2.bf16.msra.mxu0 0
        %1245 = vmatprep.mubr.bf16.mxu0 0
        %1246 = vmatmul.mubr.bf16.gmra.mxu0 %v1208
        %v1247 = vpop.f32.mrf.mxu0
        %v1248 = vadd.f32 0.0, %v1247
        %v1249 = vpop.f32.mrf.mxu0
        %v1250 = vpop.f32.mrf.mxu0
        %v1251 = vpop.f32.mrf.mxu0
        %1252 = vdwg.mxu0
        %v1253 = vpack.c.bf16 %v1248, %v1248
        %v1258 = vunpack.c.l.b16 %v629
        %v1259 = vunpack.c.l.b16 %v630
        %v1260 = vunpack.c.l.b16 %v631
        %v1261 = vunpack.c.l.b16 %v632
        %v1262 = vpack.c.b16 %v1259, %v1258
        %v1263 = vpack.c.b16 %v1261, %v1260
        %v1267 = vsel %vm636, %v1253, 0
        %1269 = vmatprep.subr.bf16.mxu0 0
        %1270 = vmatpush1.bf16.msra.mxu0 0
        %1271 = vmatprep.subr.bf16.mxu0 0
        %1272 = vmatpush1.bf16.msra.mxu0 0
        %1273 = vmatprep.subr.bf16.mxu0 0
        %1274 = vmatpush1.bf16.msra.mxu0 0
        %1275 = vmatprep.subr.bf16.mxu0 0
        %1276 = vmatpush1.bf16.msra.mxu0 0
        %1277 = vmatprep.subr.bf16.mxu0 0
        %1278 = vmatpush1.bf16.msra.mxu0 0
        %1279 = vmatprep.subr.bf16.mxu0 0
        %1280 = vmatpush1.bf16.msra.mxu0 0
        %1281 = vmatprep.subr.bf16.mxu0 0
        %1282 = vmatpush1.bf16.msra.mxu0 %v1263
        %1283 = vmatprep.subr.bf16.mxu0 0
        %1284 = vmatpush1.bf16.msra.mxu0 %v1262
        %1285 = vmatprep.subr.bf16.mxu0 0
        %1286 = vmatpush2.bf16.msra.mxu0 0
        %1287 = vmatprep.subr.bf16.mxu0 0
        %1288 = vmatpush2.bf16.msra.mxu0 0
        %1289 = vmatprep.subr.bf16.mxu0 0
        %1290 = vmatpush2.bf16.msra.mxu0 0
        %1291 = vmatprep.subr.bf16.mxu0 0
        %1292 = vmatpush2.bf16.msra.mxu0 0
        %1293 = vmatprep.subr.bf16.mxu0 0
        %1294 = vmatpush2.bf16.msra.mxu0 0
        %1295 = vmatprep.subr.bf16.mxu0 0
        %1296 = vmatpush2.bf16.msra.mxu0 0
        %1297 = vmatprep.subr.bf16.mxu0 0
        %1298 = vmatpush2.bf16.msra.mxu0 0
        %1299 = vmatprep.subr.bf16.mxu0 0
        %1300 = vmatpush2.bf16.msra.mxu0 0
        %1301 = vmatprep.mubr.bf16.mxu0 0
        %1302 = vmatmul.mubr.bf16.gmra.mxu0 %v1267
        %v1303 = vpop.f32.mrf.mxu0
        %v1304 = vadd.f32 0.0, %v1303
        %v1305 = vpop.f32.mrf.mxu0
        %v1306 = vpop.f32.mrf.mxu0
        %v1307 = vpop.f32.mrf.mxu0
        %1308 = vdwg.mxu0
        %v1309 = vadd.f32 %v1140, %v1304
        %v1310 = vadd.f32 %v324, %v1309
        %v1311 = vld [vmem:[%s6] sm:$0x1]
        %v1313 = vlaneseq
        %v1314 = vshrl.u32 %v1313, 7
        %v1315 = vsub.s32 0, %v1314
        %v1316 = vrot.slane %v1311, %v1315
        %v1318 = vadd.f32 %v1310, %v1316
        %1319 = vst [vmem:[%s322] sm:$0xff] %v1318
        %s1320 = sand.u32 %s185, 1
        %s1321 = scalar_lea.sflag [#allocation4], %s1320
        %s1322 = sand.u32 %s185, 1
        %s1323 = smul.addr %s1322, 8
        %s1324 = scalar_lea.vmem [#allocation8], %s1323
        // Predicated region
        $region61: #{tpu_custom_call.1} parent=47 // pred_check
          %p1325 = pneg %p195
        $region62: #{tpu_custom_call.1} parent=47 // pred_check_branch
          %1327 = sbr.rel (%p1325) target = $region64
        $region63: #{tpu_custom_call.1} parent=47 // pred_region
          %s1329 = ssub.s32 128, 128
          %1330 = vsyncadd %s1321, %s1329
          %s1331 = smul.addr %s25, 128
          %s1332 = scalar_lea.hbm %s7, %s1331
          %s1334 = sshll.u32 %s1324, 4
          %s1335 = int_to_ptr.vmem [resolvable:$true] %s1334
          %1337 = dma.vmem_to_hbm [thread:$0]  %s1335, 128, %s1332, %s1321
        $region64: #{tpu_custom_call.1} parent=47 // pred_fallthru
          _
      $region48: #{tpu_custom_call.1} parent=5 // pred_fallthru
        _
      %p1338 = scmp.le.s32.totalorder 2, %s20
      // Predicated region
      $region65: #{tpu_custom_call.1} parent=5 // pred_check
        %p1339 = pneg %p1338
      $region66: #{tpu_custom_call.1} parent=5 // pred_check_branch
        %1341 = sbr.rel (%p1339) target = $region68
      $region67: #{tpu_custom_call.1} parent=5 // pred_region
        %s1342 = ssub.s32 %s20, 2
        // Predicated region
        $region69: #{tpu_custom_call.1} parent=67 // pred_check
          %p1343 = pneg %p201
        $region70: #{tpu_custom_call.1} parent=67 // pred_check_branch
          %1345 = sbr.rel (%p1343) target = $region72
        $region71: #{tpu_custom_call.1} parent=67 // pred_region
          %s1346 = sand.u32 %s186, 1
          %s1347 = scalar_lea.sflag [#allocation4], %s1346
          %s1348 = sand.u32 %s186, 1
          %s1349 = smul.addr %s1348, 8
          %s1350 = scalar_lea.vmem [#allocation8], %s1349
          %1351 = dma.done %s1347, 128
        $region72: #{tpu_custom_call.1} parent=67 // pred_fallthru
          _
      $region68: #{tpu_custom_call.1} parent=5 // pred_fallthru
        _
    $region6: #{tpu_custom_call.1} parent=1 // loop_footer
      %s24 = sadd.s32 1, %s20
    $region7: #{tpu_custom_call.1} parent=1 // loop_footer_branch
      %19 = sbr.rel target = $region3
    $region8: #{tpu_custom_call.1} parent=1 // loop_exit
      _
    %1352 = vsyncpa [#allocation3], 1
    %s1353 = scalar_lea.sflag [#allocation3], 1
    %1354 = vsyncpa %s1353, 1
    %1355 = vsyncpa [#allocation6], 1
    %1356 = vsyncpa [#allocation4], 1
    %s1357 = scalar_lea.sflag [#allocation4], 1
    %1358 = vsyncpa %s1357, 1

</llo_original>
